<compile_context>
chip_gen: v6e
topology: v6e:2x2x1
jax: 0.10.0
libtpu: 0.0.40
codegen_flags: <defaults>
</compile_context>

<pallas_src>
import math

import jax
import jax.numpy as jnp
import numpy as np
from jax.experimental import pallas as pl
from jax.experimental.pallas import tpu as pltpu

EPS = 1e-07

# Abramowitz & Stegun 4.4.46 minimax fit: acos(x) = sqrt(1-x)*poly(x), |err| <= 2e-8 on [0,1].
_ACOS_COEFFS = (1.5707963050, -0.2145988016, 0.0889789874, -0.0501743046,
                0.0308918810, -0.0170881256, 0.0066700901, -0.0012624911)


def _acos01(x):
    """arccos for x in [0, 1] using only sqrt + VPU ops (no acos/atan2 in Mosaic)."""
    p = jnp.full_like(x, _ACOS_COEFFS[-1])
    for c in _ACOS_COEFFS[-2::-1]:
        p = p * x + c
    return jnp.sqrt(jnp.maximum(1.0 - x, 0.0)) * p


def _round_up(x, m):
    return ((x + m - 1) // m) * m


# ----------------------------------------------------------------------------------
# Kernel 1: weighted quaternion outer-product moment matrices
# ----------------------------------------------------------------------------------
def _moment_kernel(a_ref, q_ref, m_ref):
    a = a_ref[...]                                     # [TG, N]
    q = q_ref[...]                                     # [TG, N, 4]
    P = q.shape[-1]

    # F.normalize(A, p=1, dim=1): a / clamp_min(sum_n |a|, 1e-12)   (exact: feeds eigh)
    denom = jnp.maximum(jnp.sum(jnp.abs(a), axis=1, keepdims=True), 1e-12)   # [TG, 1]
    w = a / denom                                      # [TG, N]

    qe = q + EPS                                       # Q1 = Q1 + eps
    wq = w[:, :, None] * qe                            # [TG, N, 4]

    # M[g, 4*i + j] = sum_n w * q_i * q_j.  Each sum over the routing dim N is a
    # contiguous sublane reduce; the 16 entries are lane-concatenated into one slab.
    cols = [jnp.sum(wq[:, :, i:i + 1] * qe, axis=1) for i in range(P)]       # 4 x [TG, 4]
    m_ref[...] = jnp.concatenate(cols, axis=-1)        # [TG, 16]


def _moments_pallas(Aq, Qq, tile_g, grid):
    Gp, N = Aq.shape
    P = Qq.shape[-1]
    return pl.pallas_call(
        _moment_kernel,
        out_shape=jax.ShapeDtypeStruct((Gp, P * P), jnp.float32),
        grid_spec=pltpu.PrefetchScalarGridSpec(
            num_scalar_prefetch=0,
            grid=grid,
            in_specs=[pl.BlockSpec((tile_g, N), lambda i: (i, 0)),
                      pl.BlockSpec((tile_g, N, P), lambda i: (i, 0, 0))],
            out_specs=pl.BlockSpec((tile_g, P * P), lambda i: (i, 0)),
        ),
        compiler_params=pltpu.CompilerParams(dimension_semantics=("parallel",)),
    )(Aq, Qq)


# ----------------------------------------------------------------------------------
# Kernel 2: geodesic-distance attention + weighted feature mean
# ----------------------------------------------------------------------------------
def _attention_kernel(q_ref, k_ref, v_ref, o_ref):
    q = q_ref[...]                                     # [TG, N, 4]
    k = k_ref[...]                                     # [TG, 4]
    v = v_ref[...]                                     # [TG, N, F]
    n = q.shape[1]

    # geodesic distance between each input quaternion and the averaged pose
    dots = jnp.sum(q * k[:, None, :], axis=-1)         # [TG, N]
    x = jnp.clip(jnp.abs(dots), -1.0 + EPS, 1.0 - EPS)
    dist = (2.0 / math.pi) * _acos01(x)                # [TG, N]

    # softmax(-dist) over the routing dim N
    neg = -dist
    e = jnp.exp(neg - jnp.max(neg, axis=1, keepdims=True))
    att = e * pl.reciprocal(jnp.sum(e, axis=1, keepdims=True), approx=True)  # EUP slot

    # (att * V).mean(dim=1): weighted feature mean, sublane reduce over N
    o_ref[...] = jnp.sum(att[:, :, None] * v, axis=1) * (1.0 / n)            # [TG, F]


def _attention_pallas(Qq, Kq, Vq, tile_g, grid):
    Gp, N, P = Qq.shape
    F = Vq.shape[-1]
    return pl.pallas_call(
        _attention_kernel,
        out_shape=jax.ShapeDtypeStruct((Gp, F), jnp.float32),
        grid_spec=pltpu.PrefetchScalarGridSpec(
            num_scalar_prefetch=0,
            grid=grid,
            in_specs=[pl.BlockSpec((tile_g, N, P), lambda i: (i, 0, 0)),
                      pl.BlockSpec((tile_g, P), lambda i: (i, 0)),
                      pl.BlockSpec((tile_g, N, F), lambda i: (i, 0, 0))],
            out_specs=pl.BlockSpec((tile_g, F), lambda i: (i, 0)),
        ),
        compiler_params=pltpu.CompilerParams(dimension_semantics=("parallel",)),
    )(Qq, Kq, Vq)


# ----------------------------------------------------------------------------------
# Full PoseAttRouter forward
# ----------------------------------------------------------------------------------
def pose_att_router_pallas(A, Q, V, m_noise=None, tile_g=None):
    """A:[B,N,C], Q:[B,N,C,4], V:[B,N,C,F] -> (acts [B,C,1], out_q [B,C,4], out_f [B,C,F])."""
    B, N, C = A.shape
    P = Q.shape[-1]
    F = V.shape[-1]
    G = B * C

    # sample-major layout: one row per (b, c) routing problem, N on the sublane axis.
    Aq = jnp.transpose(A, (0, 2, 1)).reshape(G, N).astype(jnp.float32)
    Qq = jnp.transpose(Q, (0, 2, 1, 3)).reshape(G, N, P).astype(jnp.float32)
    Vq = jnp.transpose(V, (0, 2, 1, 3)).reshape(G, N, F).astype(jnp.float32)

    if tile_g is None:
        tile_g = min(256, _round_up(G, 8))        # big tiles: per-grid-step overhead ~0.35us
    tile_g = _round_up(tile_g, 8)                 # sublane alignment
    Gp = _round_up(G, tile_g)
    if Gp != G:                                   # pad instead of asserting divisibility
        Aq = jnp.pad(Aq, ((0, Gp - G), (0, 0)))
        Qq = jnp.pad(Qq, ((0, Gp - G), (0, 0), (0, 0)))
        Vq = jnp.pad(Vq, ((0, Gp - G), (0, 0), (0, 0)))
    grid = (Gp // tile_g,)

    # --- kernel 1: weighted quaternion outer-product moment matrices ---------------
    M = _moments_pallas(Aq, Qq, tile_g, grid)[:G].reshape(G, P, P)

    # torch: M = M + 1e-6 * randn_like(M). Deterministic noise is supplied by the caller.
    if m_noise is not None:
        M = M + 1e-6 * m_noise.reshape(G, P, P).astype(jnp.float32)

    # TODO(synk): torch.linalg.eigh (batched 4x4 symmetric eigendecomposition) has no
    # Pallas equivalent; it stays in plain JAX/XLA between the two Pallas kernels.
    eigs, eigvect = jnp.linalg.eigh(M)                          # ascending, like torch
    acts = (eigs[:, -1] / jnp.sum(eigs, axis=1)).reshape(B, C, 1)
    K = eigvect[:, -1, :]                                       # module's row-indexing kept

    Kq = K.astype(jnp.float32)
    if Gp != G:
        Kq = jnp.pad(Kq, ((0, Gp - G), (0, 0)))

    # --- kernel 2: geodesic attention + weighted feature mean ----------------------
    out_f = _attention_pallas(Qq, Kq, Vq, tile_g, grid)[:G].reshape(B, C, F)
    out_q = K.reshape(B, C, P)
    return acts, out_q, out_f


# ----------------------------------------------------------------------------------
# Pure-JAX mirror of the PyTorch module (reference)
# ----------------------------------------------------------------------------------
def pose_att_router_ref(A, Q, V, m_noise=None):
    B, N, C = A.shape
    P = Q.shape[-1]
    # quaternion_average
    Q1 = Q + EPS
    w = A / jnp.maximum(jnp.sum(jnp.abs(A), axis=1, keepdims=True), 1e-12)   # F.normalize p=1
    outer = w[:, :, :, None, None] * (Q1[..., :, None] * Q1[..., None, :])   # [B,N,C,4,4]
    M = jnp.sum(outer, axis=1, keepdims=True)                                # [B,1,C,4,4]
    if m_noise is not None:
        M = M + 1e-6 * m_noise.reshape(B, 1, C, P, P)
    Mf = M.reshape(-1, P, P)
    eigs, eigvect = jnp.linalg.eigh(Mf)
    acts = (eigs[:, -1] / jnp.sum(eigs, axis=1)).reshape(B, C, 1)
    K = eigvect[:, -1, :].reshape(B, 1, C, P)
    # geodesic_dist + attention
    dots = jnp.sum(Q * K, axis=-1, keepdims=True)                            # [B,N,C,1]
    dist = 2.0 * jnp.arccos(jnp.clip(jnp.abs(dots), -1.0 + EPS, 1.0 - EPS)) / jnp.pi
    att = jax.nn.softmax(-dist, axis=1)
    out_f = jnp.mean(att * V, axis=1)                                        # [B,C,F]
    out_q = K[:, 0]                                                          # [B,C,4]
    return acts, out_q, out_f


if __name__ == "__main__":
    # Small shapes: batch=4, N=9 input capsules per routing group (3x3 kernel),
    # C=8 output capsules, quaternion poses (4), feature dim F=32.
    B, N, C, Fdim = 4, 9, 8, 32
    key = jax.random.PRNGKey(0)
    ka, kq, kv, kn = jax.random.split(key, 4)
    A = jax.nn.sigmoid(jax.random.normal(ka, (B, N, C), dtype=jnp.float32))
    Q = jax.random.normal(kq, (B, N, C, 4), dtype=jnp.float32)
    Q = Q / jnp.linalg.norm(Q, axis=-1, keepdims=True)            # unit quaternions
    V = jax.random.normal(kv, (B, N, C, Fdim), dtype=jnp.float32)
    # deterministic replacement for torch.randn_like noise (shared by kernel & reference)
    m_noise = jax.random.normal(kn, (B, C, 4, 4), dtype=jnp.float32)

    # tile_g=16 -> G=B*C=32 gives a 2-step "parallel" grid (feeds both v7x TensorCores).
    acts, out_q, out_f = pose_att_router_pallas(A, Q, V, m_noise=m_noise, tile_g=16)
    jax.block_until_ready((acts, out_q, out_f))

    acts_r, out_q_r, out_f_r = pose_att_router_ref(A, Q, V, m_noise=m_noise)

    assert acts.shape == (B, C, 1) and out_q.shape == (B, C, 4) and out_f.shape == (B, C, Fdim)
    assert np.allclose(np.asarray(acts), np.asarray(acts_r), rtol=2e-3, atol=2e-3)
    # eigenvector sign is implementation-defined -> compare magnitudes for the pose output
    assert np.allclose(np.abs(np.asarray(out_q)), np.abs(np.asarray(out_q_r)),
                       rtol=2e-3, atol=2e-3)
    assert np.allclose(np.asarray(out_f), np.asarray(out_f_r), rtol=2e-3, atol=2e-3)

    print("KERNEL_OK")
</pallas_src>

<mosaic_0001>
module attributes {stable_mosaic.version = 11 : i64} {
  func.func @_moment_kernel(%arg0: i32, %arg1: memref<16x9xf32, #tpu.memory_space<vmem>>, %arg2: memref<16x9x4xf32, #tpu.memory_space<vmem>>, %arg3: memref<16x16xf32, #tpu.memory_space<vmem>>) attributes {dimension_semantics = [#tpu.dimension_semantics<parallel>], iteration_bounds = array<i64: 2>, scalar_prefetch = 0 : i64, scratch_operands = 0 : i64, tpu.core_type = #tpu.core_type<tc>, window_params = [{transform_indices = @transform_0, window_bounds = array<i64: 16, 9>}, {transform_indices = @transform_1, window_bounds = array<i64: 16, 9, 4>}, {transform_indices = @transform_2, window_bounds = array<i64: 16, 16>}]} {
    %c0 = arith.constant 0 : index
    %c0_0 = arith.constant 0 : index
    %0 = vector.load %arg1[%c0, %c0_0] : memref<16x9xf32, #tpu.memory_space<vmem>>, vector<16x9xf32>
    %c0_1 = arith.constant 0 : index
    %c0_2 = arith.constant 0 : index
    %c0_3 = arith.constant 0 : index
    %1 = vector.load %arg2[%c0_1, %c0_2, %c0_3] : memref<16x9x4xf32, #tpu.memory_space<vmem>>, vector<16x9x4xf32>
    %2 = math.absf %0 : vector<16x9xf32>
    %cst = arith.constant dense<0.000000e+00> : vector<16xf32>
    %3 = vector.multi_reduction <add>, %2, %cst [1] : vector<16x9xf32> to vector<16xf32>
    %4 = vector.shape_cast %3 : vector<16xf32> to vector<16x1xf32>
    %cst_4 = arith.constant 9.99999996E-13 : f32
    %5 = vector.broadcast %cst_4 : f32 to vector<16x1xf32>
    %6 = arith.maximumf %4, %5 : vector<16x1xf32>
    %7 = vector.broadcast %6 : vector<16x1xf32> to vector<16x9xf32>
    %8 = arith.divf %0, %7 : vector<16x9xf32>
    %cst_5 = arith.constant 1.000000e-07 : f32
    %9 = vector.broadcast %cst_5 : f32 to vector<16x9x4xf32>
    %10 = arith.addf %1, %9 : vector<16x9x4xf32>
    %11 = vector.shape_cast %8 : vector<16x9xf32> to vector<16x9x1xf32>
    %12 = vector.broadcast %11 : vector<16x9x1xf32> to vector<16x9x4xf32>
    %13 = arith.mulf %12, %10 : vector<16x9x4xf32>
    %14 = vector.extract_strided_slice %13 {offsets = [0, 0, 0], sizes = [16, 9, 1], strides = [1, 1, 1]} : vector<16x9x4xf32> to vector<16x9x1xf32>
    %15 = vector.broadcast %14 : vector<16x9x1xf32> to vector<16x9x4xf32>
    %16 = arith.mulf %15, %10 : vector<16x9x4xf32>
    %cst_6 = arith.constant dense<0.000000e+00> : vector<16x4xf32>
    %17 = vector.multi_reduction <add>, %16, %cst_6 [1] : vector<16x9x4xf32> to vector<16x4xf32>
    %18 = vector.extract_strided_slice %13 {offsets = [0, 0, 1], sizes = [16, 9, 1], strides = [1, 1, 1]} : vector<16x9x4xf32> to vector<16x9x1xf32>
    %19 = vector.broadcast %18 : vector<16x9x1xf32> to vector<16x9x4xf32>
    %20 = arith.mulf %19, %10 : vector<16x9x4xf32>
    %cst_7 = arith.constant dense<0.000000e+00> : vector<16x4xf32>
    %21 = vector.multi_reduction <add>, %20, %cst_7 [1] : vector<16x9x4xf32> to vector<16x4xf32>
    %22 = vector.extract_strided_slice %13 {offsets = [0, 0, 2], sizes = [16, 9, 1], strides = [1, 1, 1]} : vector<16x9x4xf32> to vector<16x9x1xf32>
    %23 = vector.broadcast %22 : vector<16x9x1xf32> to vector<16x9x4xf32>
    %24 = arith.mulf %23, %10 : vector<16x9x4xf32>
    %cst_8 = arith.constant dense<0.000000e+00> : vector<16x4xf32>
    %25 = vector.multi_reduction <add>, %24, %cst_8 [1] : vector<16x9x4xf32> to vector<16x4xf32>
    %26 = vector.extract_strided_slice %13 {offsets = [0, 0, 3], sizes = [16, 9, 1], strides = [1, 1, 1]} : vector<16x9x4xf32> to vector<16x9x1xf32>
    %27 = vector.broadcast %26 : vector<16x9x1xf32> to vector<16x9x4xf32>
    %28 = arith.mulf %27, %10 : vector<16x9x4xf32>
    %cst_9 = arith.constant dense<0.000000e+00> : vector<16x4xf32>
    %29 = vector.multi_reduction <add>, %28, %cst_9 [1] : vector<16x9x4xf32> to vector<16x4xf32>
    %30 = tpu.concatenate %17, %21, %25, %29 in 1 : vector<16x4xf32>, vector<16x4xf32>, vector<16x4xf32>, vector<16x4xf32> -> vector<16x16xf32>
    %c0_10 = arith.constant 0 : index
    %c0_11 = arith.constant 0 : index
    %31 = vector.load %arg3[%c0_10, %c0_11] : memref<16x16xf32, #tpu.memory_space<vmem>>, vector<16x16xf32>
    tpu.vector_store %arg3[%c0_10, %c0_11], %30 {strides = array<i32>} : memref<16x16xf32, #tpu.memory_space<vmem>>, vector<16x16xf32>,
    return
  }
  func.func @transform_0(%arg0: i32) -> (i32, i32) {
    %c0_i32 = arith.constant 0 : i32
    %c0_i32_0 = arith.constant 0 : i32
    return %arg0, %c0_i32 : i32, i32
  }
  func.func @transform_1(%arg0: i32) -> (i32, i32, i32) {
    %c0_i32 = arith.constant 0 : i32
    %c0_i32_0 = arith.constant 0 : i32
    %c0_i32_1 = arith.constant 0 : i32
    return %arg0, %c0_i32, %c0_i32_0 : i32, i32, i32
  }
  func.func @transform_2(%arg0: i32) -> (i32, i32) {
    %c0_i32 = arith.constant 0 : i32
    %c0_i32_0 = arith.constant 0 : i32
    return %arg0, %c0_i32 : i32, i32
  }
}

</mosaic_0001>

<llo_original>
// kernel: tpu_custom_call.1
$region0: #{tpu_custom_call.1}
  #allocation0 [shape = 'u32[]', space=smem, size = 0x4, offset = 0x4, fixed_abs, tag = 'smem constant byte address 0x4 - core index']
  #allocation1 [shape = 'u32[144,128]{1,0:T(1,128)}', space=vmem, size = 0x12000, scoped, tag = 'internal scratch']
  %s0 = inlined_call_operand.vmem [shape: f32[32,9], index: 0, kind: input, shape index: {}]
  %s1 = inlined_call_operand.vmem [shape: f32[32,9,4], index: 1, kind: input, shape index: {}]
  %s2 = inlined_call_operand.vmem [shape: f32[32,16], index: 2, kind: output, shape index: {}]
  %s3 = sld [smem:[#allocation0]]
  $region41: #{tpu_custom_call.1} parent=0
    _
  %s5 = ssub.s32 1, %s3
  %s6 = scalar_select 0, %s5, %s3
  loop: start=0, step=1, limit=4
  $region2: #{tpu_custom_call.1} parent=0 // loop_pre_header
    _
  $region3: #{tpu_custom_call.1} parent=0 // loop_header
    %s8 = sphi 0, %s12
    %p9 = scmp.ge.s32.totalorder %s8, 4
    %s18 = sphi 0, %s20
    %s21 = sphi 0, %s18
    %s22 = sphi 0, %s21
    %s38 = sphi 0, %s22
    %s44 = sphi 0, %s46
    %s47 = sphi 0, %s44
    %s48 = sphi 0, %s47
    %s64 = sphi 0, %s48
    %s70 = sphi 0, %s72
    %s73 = sphi 0, %s70
    %s74 = sphi 0, %s73
    %s90 = sphi 0, %s74
  $region4: #{tpu_custom_call.1} parent=0 // loop_header_branch
    %11 = sbr.rel (%p9) target = $region8
  $region5: #{tpu_custom_call.1} parent=0 // loop_body
    %s13 = ssub.s32 %s8, 1
    %s14 = ssub.s32 %s8, 2
    %s15 = sadd.s32 %s8, 1
    %s16 = ssub.s32 %s8, %s15
    %p17 = scmp.eq.s32.totalorder %s16, 0
    %s19 = sadd.s32 %s18, 1
    %s20 = scalar_select %p17, %s18, %s19
    %p23 = pneg %p17
    %p24 = scmp.eq.s32.totalorder %s8, 1
    %p25 = por %p23, %p24
    %p26 = scmp.ne.s32.totalorder %s18, %s21
    %p27 = scmp.eq.s32.totalorder %s8, 0
    %p28 = por %p26, %p27
    %p29 = scmp.ne.s32.totalorder %s18, %s21
    %p30 = scmp.eq.s32.totalorder %s13, 1
    %p31 = por %p29, %p30
    %p32 = scmp.ne.s32.totalorder %s21, %s22
    %p33 = scmp.eq.s32.totalorder %s13, 0
    %p34 = por %p32, %p33
    %p35 = scmp.ne.s32.totalorder %s21, %s22
    %p36 = scmp.eq.s32.totalorder %s14, 1
    %p37 = por %p35, %p36
    %p39 = scmp.ne.s32.totalorder %s22, %s38
    %p40 = scmp.eq.s32.totalorder %s14, 0
    %p41 = por %p39, %p40
    %s42 = ssub.s32 %s8, %s15
    %p43 = scmp.eq.s32.totalorder %s42, 0
    %s45 = sadd.s32 %s44, 1
    %s46 = scalar_select %p43, %s44, %s45
    %p49 = pneg %p43
    %p50 = scmp.eq.s32.totalorder %s8, 1
    %p51 = por %p49, %p50
    %p52 = scmp.ne.s32.totalorder %s44, %s47
    %p53 = scmp.eq.s32.totalorder %s8, 0
    %p54 = por %p52, %p53
    %p55 = scmp.ne.s32.totalorder %s44, %s47
    %p56 = scmp.eq.s32.totalorder %s13, 1
    %p57 = por %p55, %p56
    %p58 = scmp.ne.s32.totalorder %s47, %s48
    %p59 = scmp.eq.s32.totalorder %s13, 0
    %p60 = por %p58, %p59
    %p61 = scmp.ne.s32.totalorder %s47, %s48
    %p62 = scmp.eq.s32.totalorder %s14, 1
    %p63 = por %p61, %p62
    %p65 = scmp.ne.s32.totalorder %s48, %s64
    %p66 = scmp.eq.s32.totalorder %s14, 0
    %p67 = por %p65, %p66
    %s68 = ssub.s32 %s8, %s15
    %p69 = scmp.eq.s32.totalorder %s68, 0
    %s71 = sadd.s32 %s70, 1
    %s72 = scalar_select %p69, %s70, %s71
    %p75 = pneg %p69
    %p76 = scmp.eq.s32.totalorder %s8, 1
    %p77 = por %p75, %p76
    %p78 = scmp.ne.s32.totalorder %s70, %s73
    %p79 = scmp.eq.s32.totalorder %s8, 0
    %p80 = por %p78, %p79
    %p81 = scmp.ne.s32.totalorder %s70, %s73
    %p82 = scmp.eq.s32.totalorder %s13, 1
    %p83 = por %p81, %p82
    %p84 = scmp.ne.s32.totalorder %s73, %s74
    %p85 = scmp.eq.s32.totalorder %s13, 0
    %p86 = por %p84, %p85
    %p87 = scmp.ne.s32.totalorder %s73, %s74
    %p88 = scmp.eq.s32.totalorder %s14, 1
    %p89 = por %p87, %p88
    %p91 = scmp.ne.s32.totalorder %s74, %s90
    %p92 = scmp.eq.s32.totalorder %s14, 0
    %p93 = por %p91, %p92
    %p94 = scmp.le.s32.totalorder 1, %s8
    %p95 = scmp.lt.s32.totalorder %s8, 3
    %p96 = pnand %p94, %p95
    %p97 = pneg %p96
    // Predicated region
    $region9: #{tpu_custom_call.1} parent=5 // pred_check
      _
    $region10: #{tpu_custom_call.1} parent=5 // pred_check_branch
      %99 = sbr.rel (%p96) target = $region12
    $region11: #{tpu_custom_call.1} parent=5 // pred_region
      %s100 = ssub.s32 %s8, 1
    $region12: #{tpu_custom_call.1} parent=5 // pred_fallthru
      _
    %p101 = scmp.lt.s32.totalorder %s8, 2
    // Predicated region
    $region13: #{tpu_custom_call.1} parent=5 // pred_check
      %p102 = pneg %p101
    $region14: #{tpu_custom_call.1} parent=5 // pred_check_branch
      %104 = sbr.rel (%p102) target = $region16
    $region15: #{tpu_custom_call.1} parent=5 // pred_region
      // Predicated region
      $region17: #{tpu_custom_call.1} parent=15 // pred_check
        %p105 = pneg %p28
      $region18: #{tpu_custom_call.1} parent=15 // pred_check_branch
        %107 = sbr.rel (%p105) target = $region20
      $region19: #{tpu_custom_call.1} parent=15 // pred_region
        %s108 = smul.u32 2, %s8
        %p109 = scmp.lt.s32.totalorder %s108, 3
        %s110 = scalar_select %p109, %s108, 3
        %s111 = smul.addr %s110, 8
        %s112 = scalar_lea.vmem %s0, %s111
        %s113 = smul.u32 2, %s8
      $region20: #{tpu_custom_call.1} parent=15 // pred_fallthru
        _
      // Predicated region
      $region21: #{tpu_custom_call.1} parent=15 // pred_check
        %p114 = pneg %p54
      $region22: #{tpu_custom_call.1} parent=15 // pred_check_branch
        %116 = sbr.rel (%p114) target = $region24
      $region23: #{tpu_custom_call.1} parent=15 // pred_region
        %s117 = smul.u32 16, %s8
        %p118 = scmp.lt.s32.totalorder %s117, 31
        %s119 = scalar_select %p118, %s117, 31
        %s120 = smul.addr %s119, 2
        %s121 = smul.addr %s120, 8
        %s122 = scalar_lea.vmem %s1, %s121
        %s123 = smul.u32 16, %s8
      $region24: #{tpu_custom_call.1} parent=15 // pred_fallthru
        _
    $region16: #{tpu_custom_call.1} parent=5 // pred_fallthru
      _
    %p124 = scmp.le.s32.totalorder 1, %s8
    %p125 = scmp.lt.s32.totalorder %s8, 3
    %p126 = pnand %p124, %p125
    %p127 = pneg %p126
    // Predicated region
    $region25: #{tpu_custom_call.1} parent=5 // pred_check
      _
    $region26: #{tpu_custom_call.1} parent=5 // pred_check_branch
      %129 = sbr.rel (%p126) target = $region28
    $region27: #{tpu_custom_call.1} parent=5 // pred_region
      %s130 = ssub.s32 %s8, 1
      %s131 = smul.u32 2, %s13
      %p132 = scmp.lt.s32.totalorder %s131, 3
      %s133 = scalar_select %p132, %s131, 3
      %s134 = smul.addr %s133, 8
      %s135 = scalar_lea.vmem %s0, %s134
      %p136 = pneg %p34
      %p137 = pneg %p31
      %s138 = smul.u32 16, %s13
      %p139 = scmp.lt.s32.totalorder %s138, 31
      %s140 = scalar_select %p139, %s138, 31
      %s141 = smul.addr %s140, 2
      %s142 = smul.addr %s141, 8
      %s143 = scalar_lea.vmem %s1, %s142
      %p144 = pneg %p60
      %p145 = pneg %p57
      %p146 = pneg %p86
      %p147 = pneg %p83
      %s148 = smul.u32 2, %s13
      %p149 = scmp.lt.s32.totalorder %s148, 3
      %s150 = scalar_select %p149, %s148, 3
      %s151 = smul.addr %s150, 8
      %s152 = scalar_lea.vmem %s2, %s151
      %s153 = smul.u32 2, %s13
      %p154 = scmp.lt.s32.totalorder %s153, 3
      %s155 = scalar_select %p154, %s153, 3
      %s156 = smul.addr %s155, 8
      %s157 = scalar_lea.vmem %s0, %s156
      %s158 = smul.u32 2, %s13
      %s159 = smul.u32 16, %s13
      %p160 = scmp.lt.s32.totalorder %s159, 31
      %s161 = scalar_select %p160, %s159, 31
      %s162 = smul.addr %s161, 2
      %s163 = smul.addr %s162, 8
      %s164 = scalar_lea.vmem %s1, %s163
      %s165 = smul.u32 16, %s13
      %s166 = smul.u32 2, %s13
      %p167 = scmp.lt.s32.totalorder %s166, 3
      %s168 = scalar_select %p167, %s166, 3
      %s169 = smul.addr %s168, 8
      %s170 = scalar_lea.vmem %s2, %s169
      %s171 = smul.u32 2, %s13
      %v172 = vld [vmem:[%s157] sm:$0xff]
      %v173 = vld [vmem:[%s157 + $0x8] sm:$0xff]
      %v174 = vld [vmem:[%s164] sm:$0xff]
      %v175 = vld [vmem:[%s164 + $0x8] sm:$0x1]
      %v176 = vld [vmem:[%s164 + $0x10] sm:$0xff]
      %v177 = vld [vmem:[%s164 + $0x18] sm:$0x1]
      %v178 = vld [vmem:[%s164 + $0x20] sm:$0xff]
      %v179 = vld [vmem:[%s164 + $0x28] sm:$0x1]
      %v180 = vld [vmem:[%s164 + $0x30] sm:$0xff]
      %v181 = vld [vmem:[%s164 + $0x38] sm:$0x1]
      %v182 = vld [vmem:[%s164 + $0x40] sm:$0xff]
      %v183 = vld [vmem:[%s164 + $0x48] sm:$0x1]
      %v184 = vld [vmem:[%s164 + $0x50] sm:$0xff]
      %v185 = vld [vmem:[%s164 + $0x58] sm:$0x1]
      %v186 = vld [vmem:[%s164 + $0x60] sm:$0xff]
      %v187 = vld [vmem:[%s164 + $0x68] sm:$0x1]
      %v188 = vld [vmem:[%s164 + $0x70] sm:$0xff]
      %v189 = vld [vmem:[%s164 + $0x78] sm:$0x1]
      %v190 = vld [vmem:[%s164 + $0x80] sm:$0xff]
      %v191 = vld [vmem:[%s164 + $0x88] sm:$0x1]
      %v192 = vld [vmem:[%s164 + $0x90] sm:$0xff]
      %v193 = vld [vmem:[%s164 + $0x98] sm:$0x1]
      %v194 = vld [vmem:[%s164 + $0xa0] sm:$0xff]
      %v195 = vld [vmem:[%s164 + $0xa8] sm:$0x1]
      %v196 = vld [vmem:[%s164 + $0xb0] sm:$0xff]
      %v197 = vld [vmem:[%s164 + $0xb8] sm:$0x1]
      %v198 = vld [vmem:[%s164 + $0xc0] sm:$0xff]
      %v199 = vld [vmem:[%s164 + $0xc8] sm:$0x1]
      %v200 = vld [vmem:[%s164 + $0xd0] sm:$0xff]
      %v201 = vld [vmem:[%s164 + $0xd8] sm:$0x1]
      %v202 = vld [vmem:[%s164 + $0xe0] sm:$0xff]
      %v203 = vld [vmem:[%s164 + $0xe8] sm:$0x1]
      %v204 = vld [vmem:[%s164 + $0xf0] sm:$0xff]
      %v205 = vld [vmem:[%s164 + $0xf8] sm:$0x1]
      %v206 = vand.u32 2147483647, %v172
      %v207 = vand.u32 2147483647, %v173
      %vm208 = vcmask 72704
      %v209 = vsel %vm208, %v206, 0.0
      %210 = vadd.xlane.f32.xlu0 %v209
      %v211 = vpop.xlane.xlu0 %210
      %v212 = vsel %vm208, %v207, 0.0
      %213 = vadd.xlane.f32.xlu0 %v212
      %v214 = vpop.xlane.xlu0 %213
      %v215 = vmax.f32 %v211, 1e-12
      %v216 = vmax.f32 %v214, 1e-12
      %v217 = vrcp.pop %v215
      %v218 = vmul.f32 %v172, %v217
      %v219 = vrcp.pop %v216
      %v220 = vmul.f32 %v173, %v219
      %v221 = vadd.f32 %v174, 1e-07
      %v222 = vadd.f32 %v175, 1e-07
      %v223 = vadd.f32 %v176, 1e-07
      %v224 = vadd.f32 %v177, 1e-07
      %v225 = vadd.f32 %v178, 1e-07
      %v226 = vadd.f32 %v179, 1e-07
      %v227 = vadd.f32 %v180, 1e-07
      %v228 = vadd.f32 %v181, 1e-07
      %v229 = vadd.f32 %v182, 1e-07
      %v230 = vadd.f32 %v183, 1e-07
      %v231 = vadd.f32 %v184, 1e-07
      %v232 = vadd.f32 %v185, 1e-07
      %v233 = vadd.f32 %v186, 1e-07
      %v234 = vadd.f32 %v187, 1e-07
      %v235 = vadd.f32 %v188, 1e-07
      %v236 = vadd.f32 %v189, 1e-07
      %v237 = vadd.f32 %v190, 1e-07
      %v238 = vadd.f32 %v191, 1e-07
      %v239 = vadd.f32 %v192, 1e-07
      %v240 = vadd.f32 %v193, 1e-07
      %v241 = vadd.f32 %v194, 1e-07
      %v242 = vadd.f32 %v195, 1e-07
      %v243 = vadd.f32 %v196, 1e-07
      %v244 = vadd.f32 %v197, 1e-07
      %v245 = vadd.f32 %v198, 1e-07
      %v246 = vadd.f32 %v199, 1e-07
      %v247 = vadd.f32 %v200, 1e-07
      %v248 = vadd.f32 %v201, 1e-07
      %v249 = vadd.f32 %v202, 1e-07
      %v250 = vadd.f32 %v203, 1e-07
      %v251 = vadd.f32 %v204, 1e-07
      %v252 = vadd.f32 %v205, 1e-07
      %v253 = vlaneseq
      %v254 = vshrl.u32 %v253, 7
      %v255 = vsub.s32 0, %v254
      %v256 = vrot.slane %v218, %v255
      %258 = vbcast.lane.b32.xlu0 %v256, 256
      %v259 = vpop.permute.xlu0 %258
      %s261 = sor.u32 256, 8
      %262 = vbcast.lane.b32.xlu0 %v256, %s261
      %v263 = vpop.permute.xlu0 %262
      %v264 = vlaneseq
      %v265 = vshrl.u32 %v264, 7
      %v266 = vsub.s32 1, %v265
      %v267 = vrot.slane %v218, %v266
      %269 = vbcast.lane.b32.xlu0 %v267, 256
      %v270 = vpop.permute.xlu0 %269
      %s272 = sor.u32 256, 8
      %273 = vbcast.lane.b32.xlu0 %v267, %s272
      %v274 = vpop.permute.xlu0 %273
      %v275 = vlaneseq
      %v276 = vshrl.u32 %v275, 7
      %v277 = vsub.s32 2, %v276
      %v278 = vrot.slane %v218, %v277
      %280 = vbcast.lane.b32.xlu0 %v278, 256
      %v281 = vpop.permute.xlu0 %280
      %s283 = sor.u32 256, 8
      %284 = vbcast.lane.b32.xlu0 %v278, %s283
      %v285 = vpop.permute.xlu0 %284
      %v286 = vlaneseq
      %v287 = vshrl.u32 %v286, 7
      %v288 = vsub.s32 3, %v287
      %v289 = vrot.slane %v218, %v288
      %291 = vbcast.lane.b32.xlu0 %v289, 256
      %v292 = vpop.permute.xlu0 %291
      %s294 = sor.u32 256, 8
      %295 = vbcast.lane.b32.xlu0 %v289, %s294
      %v296 = vpop.permute.xlu0 %295
      %v297 = vlaneseq
      %v298 = vshrl.u32 %v297, 7
      %v299 = vsub.s32 4, %v298
      %v300 = vrot.slane %v218, %v299
      %302 = vbcast.lane.b32.xlu0 %v300, 256
      %v303 = vpop.permute.xlu0 %302
      %s305 = sor.u32 256, 8
      %306 = vbcast.lane.b32.xlu0 %v300, %s305
      %v307 = vpop.permute.xlu0 %306
      %v308 = vlaneseq
      %v309 = vshrl.u32 %v308, 7
      %v310 = vsub.s32 5, %v309
      %v311 = vrot.slane %v218, %v310
      %313 = vbcast.lane.b32.xlu0 %v311, 256
      %v314 = vpop.permute.xlu0 %313
      %s316 = sor.u32 256, 8
      %317 = vbcast.lane.b32.xlu0 %v311, %s316
      %v318 = vpop.permute.xlu0 %317
      %v319 = vlaneseq
      %v320 = vshrl.u32 %v319, 7
      %v321 = vsub.s32 6, %v320
      %v322 = vrot.slane %v218, %v321
      %324 = vbcast.lane.b32.xlu0 %v322, 256
      %v325 = vpop.permute.xlu0 %324
      %s327 = sor.u32 256, 8
      %328 = vbcast.lane.b32.xlu0 %v322, %s327
      %v329 = vpop.permute.xlu0 %328
      %v330 = vlaneseq
      %v331 = vshrl.u32 %v330, 7
      %v332 = vsub.s32 7, %v331
      %v333 = vrot.slane %v218, %v332
      %335 = vbcast.lane.b32.xlu0 %v333, 256
      %v336 = vpop.permute.xlu0 %335
      %s338 = sor.u32 256, 8
      %339 = vbcast.lane.b32.xlu0 %v333, %s338
      %v340 = vpop.permute.xlu0 %339
      %v341 = vlaneseq
      %v342 = vshrl.u32 %v341, 7
      %v343 = vsub.s32 0, %v342
      %v344 = vrot.slane %v220, %v343
      %346 = vbcast.lane.b32.xlu0 %v344, 256
      %v347 = vpop.permute.xlu0 %346
      %s349 = sor.u32 256, 8
      %350 = vbcast.lane.b32.xlu0 %v344, %s349
      %v351 = vpop.permute.xlu0 %350
      %v352 = vlaneseq
      %v353 = vshrl.u32 %v352, 7
      %v354 = vsub.s32 1, %v353
      %v355 = vrot.slane %v220, %v354
      %357 = vbcast.lane.b32.xlu0 %v355, 256
      %v358 = vpop.permute.xlu0 %357
      %s360 = sor.u32 256, 8
      %361 = vbcast.lane.b32.xlu0 %v355, %s360
      %v362 = vpop.permute.xlu0 %361
      %v363 = vlaneseq
      %v364 = vshrl.u32 %v363, 7
      %v365 = vsub.s32 2, %v364
      %v366 = vrot.slane %v220, %v365
      %368 = vbcast.lane.b32.xlu0 %v366, 256
      %v369 = vpop.permute.xlu0 %368
      %s371 = sor.u32 256, 8
      %372 = vbcast.lane.b32.xlu0 %v366, %s371
      %v373 = vpop.permute.xlu0 %372
      %v374 = vlaneseq
      %v375 = vshrl.u32 %v374, 7
      %v376 = vsub.s32 3, %v375
      %v377 = vrot.slane %v220, %v376
      %379 = vbcast.lane.b32.xlu0 %v377, 256
      %v380 = vpop.permute.xlu0 %379
      %s382 = sor.u32 256, 8
      %383 = vbcast.lane.b32.xlu0 %v377, %s382
      %v384 = vpop.permute.xlu0 %383
      %v385 = vlaneseq
      %v386 = vshrl.u32 %v385, 7
      %v387 = vsub.s32 4, %v386
      %v388 = vrot.slane %v220, %v387
      %390 = vbcast.lane.b32.xlu0 %v388, 256
      %v391 = vpop.permute.xlu0 %390
      %s393 = sor.u32 256, 8
      %394 = vbcast.lane.b32.xlu0 %v388, %s393
      %v395 = vpop.permute.xlu0 %394
      %v396 = vlaneseq
      %v397 = vshrl.u32 %v396, 7
      %v398 = vsub.s32 5, %v397
      %v399 = vrot.slane %v220, %v398
      %401 = vbcast.lane.b32.xlu0 %v399, 256
      %v402 = vpop.permute.xlu0 %401
      %s404 = sor.u32 256, 8
      %405 = vbcast.lane.b32.xlu0 %v399, %s404
      %v406 = vpop.permute.xlu0 %405
      %v407 = vlaneseq
      %v408 = vshrl.u32 %v407, 7
      %v409 = vsub.s32 6, %v408
      %v410 = vrot.slane %v220, %v409
      %412 = vbcast.lane.b32.xlu0 %v410, 256
      %v413 = vpop.permute.xlu0 %412
      %s415 = sor.u32 256, 8
      %416 = vbcast.lane.b32.xlu0 %v410, %s415
      %v417 = vpop.permute.xlu0 %416
      %v418 = vlaneseq
      %v419 = vshrl.u32 %v418, 7
      %v420 = vsub.s32 7, %v419
      %v421 = vrot.slane %v220, %v420
      %423 = vbcast.lane.b32.xlu0 %v421, 256
      %v424 = vpop.permute.xlu0 %423
      %s426 = sor.u32 256, 8
      %427 = vbcast.lane.b32.xlu0 %v421, %s426
      %v428 = vpop.permute.xlu0 %427
      %v429 = vmul.f32 %v259, %v221
      %v430 = vmul.f32 %v263, %v222
      %v431 = vmul.f32 %v270, %v223
      %v432 = vmul.f32 %v274, %v224
      %v433 = vmul.f32 %v281, %v225
      %v434 = vmul.f32 %v285, %v226
      %v435 = vmul.f32 %v292, %v227
      %v436 = vmul.f32 %v296, %v228
      %v437 = vmul.f32 %v303, %v229
      %v438 = vmul.f32 %v307, %v230
      %v439 = vmul.f32 %v314, %v231
      %v440 = vmul.f32 %v318, %v232
      %v441 = vmul.f32 %v325, %v233
      %v442 = vmul.f32 %v329, %v234
      %v443 = vmul.f32 %v336, %v235
      %v444 = vmul.f32 %v340, %v236
      %v445 = vmul.f32 %v347, %v237
      %v446 = vmul.f32 %v351, %v238
      %v447 = vmul.f32 %v358, %v239
      %v448 = vmul.f32 %v362, %v240
      %v449 = vmul.f32 %v369, %v241
      %v450 = vmul.f32 %v373, %v242
      %v451 = vmul.f32 %v380, %v243
      %v452 = vmul.f32 %v384, %v244
      %v453 = vmul.f32 %v391, %v245
      %v454 = vmul.f32 %v395, %v246
      %v455 = vmul.f32 %v402, %v247
      %v456 = vmul.f32 %v406, %v248
      %v457 = vmul.f32 %v413, %v249
      %v458 = vmul.f32 %v417, %v250
      %v459 = vmul.f32 %v424, %v251
      %v460 = vmul.f32 %v428, %v252
      %462 = vset.pattern.permute.xlu0 0
      %463 = vperm.xlu0 %462, %v429
      %v464 = vpop.permute.xlu0 %463
      %467 = vset.pattern.permute.xlu0 0
      %468 = vperm.xlu0 %467, %v430
      %v469 = vpop.permute.xlu0 %468
      %472 = vset.pattern.permute.xlu0 0
      %473 = vperm.xlu0 %472, %v431
      %v474 = vpop.permute.xlu0 %473
      %477 = vset.pattern.permute.xlu0 0
      %478 = vperm.xlu0 %477, %v432
      %v479 = vpop.permute.xlu0 %478
      %482 = vset.pattern.permute.xlu0 0
      %483 = vperm.xlu0 %482, %v433
      %v484 = vpop.permute.xlu0 %483
      %487 = vset.pattern.permute.xlu0 0
      %488 = vperm.xlu0 %487, %v434
      %v489 = vpop.permute.xlu0 %488
      %492 = vset.pattern.permute.xlu0 0
      %493 = vperm.xlu0 %492, %v435
      %v494 = vpop.permute.xlu0 %493
      %497 = vset.pattern.permute.xlu0 0
      %498 = vperm.xlu0 %497, %v436
      %v499 = vpop.permute.xlu0 %498
      %502 = vset.pattern.permute.xlu0 0
      %503 = vperm.xlu0 %502, %v437
      %v504 = vpop.permute.xlu0 %503
      %507 = vset.pattern.permute.xlu0 0
      %508 = vperm.xlu0 %507, %v438
      %v509 = vpop.permute.xlu0 %508
      %512 = vset.pattern.permute.xlu0 0
      %513 = vperm.xlu0 %512, %v439
      %v514 = vpop.permute.xlu0 %513
      %517 = vset.pattern.permute.xlu0 0
      %518 = vperm.xlu0 %517, %v440
      %v519 = vpop.permute.xlu0 %518
      %522 = vset.pattern.permute.xlu0 0
      %523 = vperm.xlu0 %522, %v441
      %v524 = vpop.permute.xlu0 %523
      %527 = vset.pattern.permute.xlu0 0
      %528 = vperm.xlu0 %527, %v442
      %v529 = vpop.permute.xlu0 %528
      %532 = vset.pattern.permute.xlu0 0
      %533 = vperm.xlu0 %532, %v443
      %v534 = vpop.permute.xlu0 %533
      %537 = vset.pattern.permute.xlu0 0
      %538 = vperm.xlu0 %537, %v444
      %v539 = vpop.permute.xlu0 %538
      %542 = vset.pattern.permute.xlu0 0
      %543 = vperm.xlu0 %542, %v445
      %v544 = vpop.permute.xlu0 %543
      %547 = vset.pattern.permute.xlu0 0
      %548 = vperm.xlu0 %547, %v446
      %v549 = vpop.permute.xlu0 %548
      %552 = vset.pattern.permute.xlu0 0
      %553 = vperm.xlu0 %552, %v447
      %v554 = vpop.permute.xlu0 %553
      %557 = vset.pattern.permute.xlu0 0
      %558 = vperm.xlu0 %557, %v448
      %v559 = vpop.permute.xlu0 %558
      %562 = vset.pattern.permute.xlu0 0
      %563 = vperm.xlu0 %562, %v449
      %v564 = vpop.permute.xlu0 %563
      %567 = vset.pattern.permute.xlu0 0
      %568 = vperm.xlu0 %567, %v450
      %v569 = vpop.permute.xlu0 %568
      %572 = vset.pattern.permute.xlu0 0
      %573 = vperm.xlu0 %572, %v451
      %v574 = vpop.permute.xlu0 %573
      %577 = vset.pattern.permute.xlu0 0
      %578 = vperm.xlu0 %577, %v452
      %v579 = vpop.permute.xlu0 %578
      %582 = vset.pattern.permute.xlu0 0
      %583 = vperm.xlu0 %582, %v453
      %v584 = vpop.permute.xlu0 %583
      %587 = vset.pattern.permute.xlu0 0
      %588 = vperm.xlu0 %587, %v454
      %v589 = vpop.permute.xlu0 %588
      %592 = vset.pattern.permute.xlu0 0
      %593 = vperm.xlu0 %592, %v455
      %v594 = vpop.permute.xlu0 %593
      %597 = vset.pattern.permute.xlu0 0
      %598 = vperm.xlu0 %597, %v456
      %v599 = vpop.permute.xlu0 %598
      %602 = vset.pattern.permute.xlu0 0
      %603 = vperm.xlu0 %602, %v457
      %v604 = vpop.permute.xlu0 %603
      %607 = vset.pattern.permute.xlu0 0
      %608 = vperm.xlu0 %607, %v458
      %v609 = vpop.permute.xlu0 %608
      %612 = vset.pattern.permute.xlu0 0
      %613 = vperm.xlu0 %612, %v459
      %v614 = vpop.permute.xlu0 %613
      %617 = vset.pattern.permute.xlu0 0
      %618 = vperm.xlu0 %617, %v460
      %v619 = vpop.permute.xlu0 %618
      %v621 = vmul.f32 %v464, %v221
      %v622 = vmul.f32 %v469, %v222
      %v623 = vmul.f32 %v474, %v223
      %v624 = vmul.f32 %v479, %v224
      %v625 = vmul.f32 %v484, %v225
      %v626 = vmul.f32 %v489, %v226
      %v627 = vmul.f32 %v494, %v227
      %v628 = vmul.f32 %v499, %v228
      %v629 = vmul.f32 %v504, %v229
      %v630 = vmul.f32 %v509, %v230
      %v631 = vmul.f32 %v514, %v231
      %v632 = vmul.f32 %v519, %v232
      %v633 = vmul.f32 %v524, %v233
      %v634 = vmul.f32 %v529, %v234
      %v635 = vmul.f32 %v534, %v235
      %v636 = vmul.f32 %v539, %v236
      %v637 = vmul.f32 %v544, %v237
      %v638 = vmul.f32 %v549, %v238
      %v639 = vmul.f32 %v554, %v239
      %v640 = vmul.f32 %v559, %v240
      %v641 = vmul.f32 %v564, %v241
      %v642 = vmul.f32 %v569, %v242
      %v643 = vmul.f32 %v574, %v243
      %v644 = vmul.f32 %v579, %v244
      %v645 = vmul.f32 %v584, %v245
      %v646 = vmul.f32 %v589, %v246
      %v647 = vmul.f32 %v594, %v247
      %v648 = vmul.f32 %v599, %v248
      %v649 = vmul.f32 %v604, %v249
      %v650 = vmul.f32 %v609, %v250
      %v651 = vmul.f32 %v614, %v251
      %v652 = vmul.f32 %v619, %v252
      %vm653 = vcmask 31744
      %v654 = vsel %vm653, %v621, 0.0
      %vm655 = vcmask 24576
      %v656 = vsel %vm655, %v622, 0.0
      %v657 = vadd.f32 %v654, %v656
      %v658 = vrot.slane %v657, 4
      %v659 = vadd.f32 %v657, %v658
      %v660 = vrot.slane %v659, 2
      %v661 = vadd.f32 %v659, %v660
      %v662 = vrot.slane %v661, 1
      %v663 = vadd.f32 %v661, %v662
      %v664 = vsel %vm653, %v623, 0.0
      %v665 = vsel %vm655, %v624, 0.0
      %v666 = vadd.f32 %v664, %v665
      %v667 = vrot.slane %v666, 4
      %v668 = vadd.f32 %v666, %v667
      %v669 = vrot.slane %v668, 2
      %v670 = vadd.f32 %v668, %v669
      %v671 = vrot.slane %v670, 1
      %v672 = vadd.f32 %v670, %v671
      %v673 = vsel %vm653, %v625, 0.0
      %v674 = vsel %vm655, %v626, 0.0
      %v675 = vadd.f32 %v673, %v674
      %v676 = vrot.slane %v675, 4
      %v677 = vadd.f32 %v675, %v676
      %v678 = vrot.slane %v677, 2
      %v679 = vadd.f32 %v677, %v678
      %v680 = vrot.slane %v679, 1
      %v681 = vadd.f32 %v679, %v680
      %v682 = vsel %vm653, %v627, 0.0
      %v683 = vsel %vm655, %v628, 0.0
      %v684 = vadd.f32 %v682, %v683
      %v685 = vrot.slane %v684, 4
      %v686 = vadd.f32 %v684, %v685
      %v687 = vrot.slane %v686, 2
      %v688 = vadd.f32 %v686, %v687
      %v689 = vrot.slane %v688, 1
      %v690 = vadd.f32 %v688, %v689
      %v691 = vsel %vm653, %v629, 0.0
      %v692 = vsel %vm655, %v630, 0.0
      %v693 = vadd.f32 %v691, %v692
      %v694 = vrot.slane %v693, 4
      %v695 = vadd.f32 %v693, %v694
      %v696 = vrot.slane %v695, 2
      %v697 = vadd.f32 %v695, %v696
      %v698 = vrot.slane %v697, 1
      %v699 = vadd.f32 %v697, %v698
      %v700 = vsel %vm653, %v631, 0.0
      %v701 = vsel %vm655, %v632, 0.0
      %v702 = vadd.f32 %v700, %v701
      %v703 = vrot.slane %v702, 4
      %v704 = vadd.f32 %v702, %v703
      %v705 = vrot.slane %v704, 2
      %v706 = vadd.f32 %v704, %v705
      %v707 = vrot.slane %v706, 1
      %v708 = vadd.f32 %v706, %v707
      %v709 = vsel %vm653, %v633, 0.0
      %v710 = vsel %vm655, %v634, 0.0
      %v711 = vadd.f32 %v709, %v710
      %v712 = vrot.slane %v711, 4
      %v713 = vadd.f32 %v711, %v712
      %v714 = vrot.slane %v713, 2
      %v715 = vadd.f32 %v713, %v714
      %v716 = vrot.slane %v715, 1
      %v717 = vadd.f32 %v715, %v716
      %v718 = vsel %vm653, %v635, 0.0
      %v719 = vsel %vm655, %v636, 0.0
      %v720 = vadd.f32 %v718, %v719
      %v721 = vrot.slane %v720, 4
      %v722 = vadd.f32 %v720, %v721
      %v723 = vrot.slane %v722, 2
      %v724 = vadd.f32 %v722, %v723
      %v725 = vrot.slane %v724, 1
      %v726 = vadd.f32 %v724, %v725
      %v727 = vsel %vm653, %v637, 0.0
      %v728 = vsel %vm655, %v638, 0.0
      %v729 = vadd.f32 %v727, %v728
      %v730 = vrot.slane %v729, 4
      %v731 = vadd.f32 %v729, %v730
      %v732 = vrot.slane %v731, 2
      %v733 = vadd.f32 %v731, %v732
      %v734 = vrot.slane %v733, 1
      %v735 = vadd.f32 %v733, %v734
      %v736 = vsel %vm653, %v639, 0.0
      %v737 = vsel %vm655, %v640, 0.0
      %v738 = vadd.f32 %v736, %v737
      %v739 = vrot.slane %v738, 4
      %v740 = vadd.f32 %v738, %v739
      %v741 = vrot.slane %v740, 2
      %v742 = vadd.f32 %v740, %v741
      %v743 = vrot.slane %v742, 1
      %v744 = vadd.f32 %v742, %v743
      %v745 = vsel %vm653, %v641, 0.0
      %v746 = vsel %vm655, %v642, 0.0
      %v747 = vadd.f32 %v745, %v746
      %v748 = vrot.slane %v747, 4
      %v749 = vadd.f32 %v747, %v748
      %v750 = vrot.slane %v749, 2
      %v751 = vadd.f32 %v749, %v750
      %v752 = vrot.slane %v751, 1
      %v753 = vadd.f32 %v751, %v752
      %v754 = vsel %vm653, %v643, 0.0
      %v755 = vsel %vm655, %v644, 0.0
      %v756 = vadd.f32 %v754, %v755
      %v757 = vrot.slane %v756, 4
      %v758 = vadd.f32 %v756, %v757
      %v759 = vrot.slane %v758, 2
      %v760 = vadd.f32 %v758, %v759
      %v761 = vrot.slane %v760, 1
      %v762 = vadd.f32 %v760, %v761
      %v763 = vsel %vm653, %v645, 0.0
      %v764 = vsel %vm655, %v646, 0.0
      %v765 = vadd.f32 %v763, %v764
      %v766 = vrot.slane %v765, 4
      %v767 = vadd.f32 %v765, %v766
      %v768 = vrot.slane %v767, 2
      %v769 = vadd.f32 %v767, %v768
      %v770 = vrot.slane %v769, 1
      %v771 = vadd.f32 %v769, %v770
      %v772 = vsel %vm653, %v647, 0.0
      %v773 = vsel %vm655, %v648, 0.0
      %v774 = vadd.f32 %v772, %v773
      %v775 = vrot.slane %v774, 4
      %v776 = vadd.f32 %v774, %v775
      %v777 = vrot.slane %v776, 2
      %v778 = vadd.f32 %v776, %v777
      %v779 = vrot.slane %v778, 1
      %v780 = vadd.f32 %v778, %v779
      %v781 = vsel %vm653, %v649, 0.0
      %v782 = vsel %vm655, %v650, 0.0
      %v783 = vadd.f32 %v781, %v782
      %v784 = vrot.slane %v783, 4
      %v785 = vadd.f32 %v783, %v784
      %v786 = vrot.slane %v785, 2
      %v787 = vadd.f32 %v785, %v786
      %v788 = vrot.slane %v787, 1
      %v789 = vadd.f32 %v787, %v788
      %v790 = vsel %vm653, %v651, 0.0
      %v791 = vsel %vm655, %v652, 0.0
      %v792 = vadd.f32 %v790, %v791
      %v793 = vrot.slane %v792, 4
      %v794 = vadd.f32 %v792, %v793
      %v795 = vrot.slane %v794, 2
      %v796 = vadd.f32 %v794, %v795
      %v797 = vrot.slane %v796, 1
      %v798 = vadd.f32 %v796, %v797
      %799 = vset.pattern.permute.xlu0 1
      %800 = vperm.xlu0 %799, %v429
      %v801 = vpop.permute.xlu0 %800
      %803 = vset.pattern.permute.xlu0 1
      %804 = vperm.xlu0 %803, %v430
      %v805 = vpop.permute.xlu0 %804
      %807 = vset.pattern.permute.xlu0 1
      %808 = vperm.xlu0 %807, %v431
      %v809 = vpop.permute.xlu0 %808
      %811 = vset.pattern.permute.xlu0 1
      %812 = vperm.xlu0 %811, %v432
      %v813 = vpop.permute.xlu0 %812
      %815 = vset.pattern.permute.xlu0 1
      %816 = vperm.xlu0 %815, %v433
      %v817 = vpop.permute.xlu0 %816
      %819 = vset.pattern.permute.xlu0 1
      %820 = vperm.xlu0 %819, %v434
      %v821 = vpop.permute.xlu0 %820
      %823 = vset.pattern.permute.xlu0 1
      %824 = vperm.xlu0 %823, %v435
      %v825 = vpop.permute.xlu0 %824
      %827 = vset.pattern.permute.xlu0 1
      %828 = vperm.xlu0 %827, %v436
      %v829 = vpop.permute.xlu0 %828
      %831 = vset.pattern.permute.xlu0 1
      %832 = vperm.xlu0 %831, %v437
      %v833 = vpop.permute.xlu0 %832
      %835 = vset.pattern.permute.xlu0 1
      %836 = vperm.xlu0 %835, %v438
      %v837 = vpop.permute.xlu0 %836
      %839 = vset.pattern.permute.xlu0 1
      %840 = vperm.xlu0 %839, %v439
      %v841 = vpop.permute.xlu0 %840
      %843 = vset.pattern.permute.xlu0 1
      %844 = vperm.xlu0 %843, %v440
      %v845 = vpop.permute.xlu0 %844
      %847 = vset.pattern.permute.xlu0 1
      %848 = vperm.xlu0 %847, %v441
      %v849 = vpop.permute.xlu0 %848
      %851 = vset.pattern.permute.xlu0 1
      %852 = vperm.xlu0 %851, %v442
      %v853 = vpop.permute.xlu0 %852
      %855 = vset.pattern.permute.xlu0 1
      %856 = vperm.xlu0 %855, %v443
      %v857 = vpop.permute.xlu0 %856
      %859 = vset.pattern.permute.xlu0 1
      %860 = vperm.xlu0 %859, %v444
      %v861 = vpop.permute.xlu0 %860
      %863 = vset.pattern.permute.xlu0 1
      %864 = vperm.xlu0 %863, %v445
      %v865 = vpop.permute.xlu0 %864
      %867 = vset.pattern.permute.xlu0 1
      %868 = vperm.xlu0 %867, %v446
      %v869 = vpop.permute.xlu0 %868
      %871 = vset.pattern.permute.xlu0 1
      %872 = vperm.xlu0 %871, %v447
      %v873 = vpop.permute.xlu0 %872
      %875 = vset.pattern.permute.xlu0 1
      %876 = vperm.xlu0 %875, %v448
      %v877 = vpop.permute.xlu0 %876
      %879 = vset.pattern.permute.xlu0 1
      %880 = vperm.xlu0 %879, %v449
      %v881 = vpop.permute.xlu0 %880
      %883 = vset.pattern.permute.xlu0 1
      %884 = vperm.xlu0 %883, %v450
      %v885 = vpop.permute.xlu0 %884
      %887 = vset.pattern.permute.xlu0 1
      %888 = vperm.xlu0 %887, %v451
      %v889 = vpop.permute.xlu0 %888
      %891 = vset.pattern.permute.xlu0 1
      %892 = vperm.xlu0 %891, %v452
      %v893 = vpop.permute.xlu0 %892
      %895 = vset.pattern.permute.xlu0 1
      %896 = vperm.xlu0 %895, %v453
      %v897 = vpop.permute.xlu0 %896
      %899 = vset.pattern.permute.xlu0 1
      %900 = vperm.xlu0 %899, %v454
      %v901 = vpop.permute.xlu0 %900
      %903 = vset.pattern.permute.xlu0 1
      %904 = vperm.xlu0 %903, %v455
      %v905 = vpop.permute.xlu0 %904
      %907 = vset.pattern.permute.xlu0 1
      %908 = vperm.xlu0 %907, %v456
      %v909 = vpop.permute.xlu0 %908
      %911 = vset.pattern.permute.xlu0 1
      %912 = vperm.xlu0 %911, %v457
      %v913 = vpop.permute.xlu0 %912
      %915 = vset.pattern.permute.xlu0 1
      %916 = vperm.xlu0 %915, %v458
      %v917 = vpop.permute.xlu0 %916
      %919 = vset.pattern.permute.xlu0 1
      %920 = vperm.xlu0 %919, %v459
      %v921 = vpop.permute.xlu0 %920
      %923 = vset.pattern.permute.xlu0 1
      %924 = vperm.xlu0 %923, %v460
      %v925 = vpop.permute.xlu0 %924
      %v927 = vmul.f32 %v801, %v221
      %v928 = vmul.f32 %v805, %v222
      %v929 = vmul.f32 %v809, %v223
      %v930 = vmul.f32 %v813, %v224
      %v931 = vmul.f32 %v817, %v225
      %v932 = vmul.f32 %v821, %v226
      %v933 = vmul.f32 %v825, %v227
      %v934 = vmul.f32 %v829, %v228
      %v935 = vmul.f32 %v833, %v229
      %v936 = vmul.f32 %v837, %v230
      %v937 = vmul.f32 %v841, %v231
      %v938 = vmul.f32 %v845, %v232
      %v939 = vmul.f32 %v849, %v233
      %v940 = vmul.f32 %v853, %v234
      %v941 = vmul.f32 %v857, %v235
      %v942 = vmul.f32 %v861, %v236
      %v943 = vmul.f32 %v865, %v237
      %v944 = vmul.f32 %v869, %v238
      %v945 = vmul.f32 %v873, %v239
      %v946 = vmul.f32 %v877, %v240
      %v947 = vmul.f32 %v881, %v241
      %v948 = vmul.f32 %v885, %v242
      %v949 = vmul.f32 %v889, %v243
      %v950 = vmul.f32 %v893, %v244
      %v951 = vmul.f32 %v897, %v245
      %v952 = vmul.f32 %v901, %v246
      %v953 = vmul.f32 %v905, %v247
      %v954 = vmul.f32 %v909, %v248
      %v955 = vmul.f32 %v913, %v249
      %v956 = vmul.f32 %v917, %v250
      %v957 = vmul.f32 %v921, %v251
      %v958 = vmul.f32 %v925, %v252
      %v959 = vsel %vm653, %v927, 0.0
      %v960 = vsel %vm655, %v928, 0.0
      %v961 = vadd.f32 %v959, %v960
      %v962 = vrot.slane %v961, 4
      %v963 = vadd.f32 %v961, %v962
      %v964 = vrot.slane %v963, 2
      %v965 = vadd.f32 %v963, %v964
      %v966 = vrot.slane %v965, 1
      %v967 = vadd.f32 %v965, %v966
      %v968 = vsel %vm653, %v929, 0.0
      %v969 = vsel %vm655, %v930, 0.0
      %v970 = vadd.f32 %v968, %v969
      %v971 = vrot.slane %v970, 4
      %v972 = vadd.f32 %v970, %v971
      %v973 = vrot.slane %v972, 2
      %v974 = vadd.f32 %v972, %v973
      %v975 = vrot.slane %v974, 1
      %v976 = vadd.f32 %v974, %v975
      %v977 = vsel %vm653, %v931, 0.0
      %v978 = vsel %vm655, %v932, 0.0
      %v979 = vadd.f32 %v977, %v978
      %v980 = vrot.slane %v979, 4
      %v981 = vadd.f32 %v979, %v980
      %v982 = vrot.slane %v981, 2
      %v983 = vadd.f32 %v981, %v982
      %v984 = vrot.slane %v983, 1
      %v985 = vadd.f32 %v983, %v984
      %v986 = vsel %vm653, %v933, 0.0
      %v987 = vsel %vm655, %v934, 0.0
      %v988 = vadd.f32 %v986, %v987
      %v989 = vrot.slane %v988, 4
      %v990 = vadd.f32 %v988, %v989
      %v991 = vrot.slane %v990, 2
      %v992 = vadd.f32 %v990, %v991
      %v993 = vrot.slane %v992, 1
      %v994 = vadd.f32 %v992, %v993
      %v995 = vsel %vm653, %v935, 0.0
      %v996 = vsel %vm655, %v936, 0.0
      %v997 = vadd.f32 %v995, %v996
      %v998 = vrot.slane %v997, 4
      %v999 = vadd.f32 %v997, %v998
      %v1000 = vrot.slane %v999, 2
      %v1001 = vadd.f32 %v999, %v1000
      %v1002 = vrot.slane %v1001, 1
      %v1003 = vadd.f32 %v1001, %v1002
      %v1004 = vsel %vm653, %v937, 0.0
      %v1005 = vsel %vm655, %v938, 0.0
      %v1006 = vadd.f32 %v1004, %v1005
      %v1007 = vrot.slane %v1006, 4
      %v1008 = vadd.f32 %v1006, %v1007
      %v1009 = vrot.slane %v1008, 2
      %v1010 = vadd.f32 %v1008, %v1009
      %v1011 = vrot.slane %v1010, 1
      %v1012 = vadd.f32 %v1010, %v1011
      %v1013 = vsel %vm653, %v939, 0.0
      %v1014 = vsel %vm655, %v940, 0.0
      %v1015 = vadd.f32 %v1013, %v1014
      %v1016 = vrot.slane %v1015, 4
      %v1017 = vadd.f32 %v1015, %v1016
      %v1018 = vrot.slane %v1017, 2
      %v1019 = vadd.f32 %v1017, %v1018
      %v1020 = vrot.slane %v1019, 1
      %v1021 = vadd.f32 %v1019, %v1020
      %v1022 = vsel %vm653, %v941, 0.0
      %v1023 = vsel %vm655, %v942, 0.0
      %v1024 = vadd.f32 %v1022, %v1023
      %v1025 = vrot.slane %v1024, 4
      %v1026 = vadd.f32 %v1024, %v1025
      %v1027 = vrot.slane %v1026, 2
      %v1028 = vadd.f32 %v1026, %v1027
      %v1029 = vrot.slane %v1028, 1
      %v1030 = vadd.f32 %v1028, %v1029
      %v1031 = vsel %vm653, %v943, 0.0
      %v1032 = vsel %vm655, %v944, 0.0
      %v1033 = vadd.f32 %v1031, %v1032
      %v1034 = vrot.slane %v1033, 4
      %v1035 = vadd.f32 %v1033, %v1034
      %v1036 = vrot.slane %v1035, 2
      %v1037 = vadd.f32 %v1035, %v1036
      %v1038 = vrot.slane %v1037, 1
      %v1039 = vadd.f32 %v1037, %v1038
      %v1040 = vsel %vm653, %v945, 0.0
      %v1041 = vsel %vm655, %v946, 0.0
      %v1042 = vadd.f32 %v1040, %v1041
      %v1043 = vrot.slane %v1042, 4
      %v1044 = vadd.f32 %v1042, %v1043
      %v1045 = vrot.slane %v1044, 2
      %v1046 = vadd.f32 %v1044, %v1045
      %v1047 = vrot.slane %v1046, 1
      %v1048 = vadd.f32 %v1046, %v1047
      %v1049 = vsel %vm653, %v947, 0.0
      %v1050 = vsel %vm655, %v948, 0.0
      %v1051 = vadd.f32 %v1049, %v1050
      %v1052 = vrot.slane %v1051, 4
      %v1053 = vadd.f32 %v1051, %v1052
      %v1054 = vrot.slane %v1053, 2
      %v1055 = vadd.f32 %v1053, %v1054
      %v1056 = vrot.slane %v1055, 1
      %v1057 = vadd.f32 %v1055, %v1056
      %v1058 = vsel %vm653, %v949, 0.0
      %v1059 = vsel %vm655, %v950, 0.0
      %v1060 = vadd.f32 %v1058, %v1059
      %v1061 = vrot.slane %v1060, 4
      %v1062 = vadd.f32 %v1060, %v1061
      %v1063 = vrot.slane %v1062, 2
      %v1064 = vadd.f32 %v1062, %v1063
      %v1065 = vrot.slane %v1064, 1
      %v1066 = vadd.f32 %v1064, %v1065
      %v1067 = vsel %vm653, %v951, 0.0
      %v1068 = vsel %vm655, %v952, 0.0
      %v1069 = vadd.f32 %v1067, %v1068
      %v1070 = vrot.slane %v1069, 4
      %v1071 = vadd.f32 %v1069, %v1070
      %v1072 = vrot.slane %v1071, 2
      %v1073 = vadd.f32 %v1071, %v1072
      %v1074 = vrot.slane %v1073, 1
      %v1075 = vadd.f32 %v1073, %v1074
      %v1076 = vsel %vm653, %v953, 0.0
      %v1077 = vsel %vm655, %v954, 0.0
      %v1078 = vadd.f32 %v1076, %v1077
      %v1079 = vrot.slane %v1078, 4
      %v1080 = vadd.f32 %v1078, %v1079
      %v1081 = vrot.slane %v1080, 2
      %v1082 = vadd.f32 %v1080, %v1081
      %v1083 = vrot.slane %v1082, 1
      %v1084 = vadd.f32 %v1082, %v1083
      %v1085 = vsel %vm653, %v955, 0.0
      %v1086 = vsel %vm655, %v956, 0.0
      %v1087 = vadd.f32 %v1085, %v1086
      %v1088 = vrot.slane %v1087, 4
      %v1089 = vadd.f32 %v1087, %v1088
      %v1090 = vrot.slane %v1089, 2
      %v1091 = vadd.f32 %v1089, %v1090
      %v1092 = vrot.slane %v1091, 1
      %v1093 = vadd.f32 %v1091, %v1092
      %v1094 = vsel %vm653, %v957, 0.0
      %v1095 = vsel %vm655, %v958, 0.0
      %v1096 = vadd.f32 %v1094, %v1095
      %v1097 = vrot.slane %v1096, 4
      %v1098 = vadd.f32 %v1096, %v1097
      %v1099 = vrot.slane %v1098, 2
      %v1100 = vadd.f32 %v1098, %v1099
      %v1101 = vrot.slane %v1100, 1
      %v1102 = vadd.f32 %v1100, %v1101
      %1103 = vset.pattern.permute.xlu0 2
      %1104 = vperm.xlu0 %1103, %v429
      %v1105 = vpop.permute.xlu0 %1104
      %1107 = vset.pattern.permute.xlu0 2
      %1108 = vperm.xlu0 %1107, %v430
      %v1109 = vpop.permute.xlu0 %1108
      %1111 = vset.pattern.permute.xlu0 2
      %1112 = vperm.xlu0 %1111, %v431
      %v1113 = vpop.permute.xlu0 %1112
      %1115 = vset.pattern.permute.xlu0 2
      %1116 = vperm.xlu0 %1115, %v432
      %v1117 = vpop.permute.xlu0 %1116
      %1119 = vset.pattern.permute.xlu0 2
      %1120 = vperm.xlu0 %1119, %v433
      %v1121 = vpop.permute.xlu0 %1120
      %1123 = vset.pattern.permute.xlu0 2
      %1124 = vperm.xlu0 %1123, %v434
      %v1125 = vpop.permute.xlu0 %1124
      %1127 = vset.pattern.permute.xlu0 2
      %1128 = vperm.xlu0 %1127, %v435
      %v1129 = vpop.permute.xlu0 %1128
      %1131 = vset.pattern.permute.xlu0 2
      %1132 = vperm.xlu0 %1131, %v436
      %v1133 = vpop.permute.xlu0 %1132
      %1135 = vset.pattern.permute.xlu0 2
      %1136 = vperm.xlu0 %1135, %v437
      %v1137 = vpop.permute.xlu0 %1136
      %1139 = vset.pattern.permute.xlu0 2
      %1140 = vperm.xlu0 %1139, %v438
      %v1141 = vpop.permute.xlu0 %1140
      %1143 = vset.pattern.permute.xlu0 2
      %1144 = vperm.xlu0 %1143, %v439
      %v1145 = vpop.permute.xlu0 %1144
      %1147 = vset.pattern.permute.xlu0 2
      %1148 = vperm.xlu0 %1147, %v440
      %v1149 = vpop.permute.xlu0 %1148
      %1151 = vset.pattern.permute.xlu0 2
      %1152 = vperm.xlu0 %1151, %v441
      %v1153 = vpop.permute.xlu0 %1152
      %1155 = vset.pattern.permute.xlu0 2
      %1156 = vperm.xlu0 %1155, %v442
      %v1157 = vpop.permute.xlu0 %1156
      %1159 = vset.pattern.permute.xlu0 2
      %1160 = vperm.xlu0 %1159, %v443
      %v1161 = vpop.permute.xlu0 %1160
      %1163 = vset.pattern.permute.xlu0 2
      %1164 = vperm.xlu0 %1163, %v444
      %v1165 = vpop.permute.xlu0 %1164
      %1167 = vset.pattern.permute.xlu0 2
      %1168 = vperm.xlu0 %1167, %v445
      %v1169 = vpop.permute.xlu0 %1168
      %1171 = vset.pattern.permute.xlu0 2
      %1172 = vperm.xlu0 %1171, %v446
      %v1173 = vpop.permute.xlu0 %1172
      %1175 = vset.pattern.permute.xlu0 2
      %1176 = vperm.xlu0 %1175, %v447
      %v1177 = vpop.permute.xlu0 %1176
      %1179 = vset.pattern.permute.xlu0 2
      %1180 = vperm.xlu0 %1179, %v448
      %v1181 = vpop.permute.xlu0 %1180
      %1183 = vset.pattern.permute.xlu0 2
      %1184 = vperm.xlu0 %1183, %v449
      %v1185 = vpop.permute.xlu0 %1184
      %1187 = vset.pattern.permute.xlu0 2
      %1188 = vperm.xlu0 %1187, %v450
      %v1189 = vpop.permute.xlu0 %1188
      %1191 = vset.pattern.permute.xlu0 2
      %1192 = vperm.xlu0 %1191, %v451
      %v1193 = vpop.permute.xlu0 %1192
      %1195 = vset.pattern.permute.xlu0 2
      %1196 = vperm.xlu0 %1195, %v452
      %v1197 = vpop.permute.xlu0 %1196
      %1199 = vset.pattern.permute.xlu0 2
      %1200 = vperm.xlu0 %1199, %v453
      %v1201 = vpop.permute.xlu0 %1200
      %1203 = vset.pattern.permute.xlu0 2
      %1204 = vperm.xlu0 %1203, %v454
      %v1205 = vpop.permute.xlu0 %1204
      %1207 = vset.pattern.permute.xlu0 2
      %1208 = vperm.xlu0 %1207, %v455
      %v1209 = vpop.permute.xlu0 %1208
      %1211 = vset.pattern.permute.xlu0 2
      %1212 = vperm.xlu0 %1211, %v456
      %v1213 = vpop.permute.xlu0 %1212
      %1215 = vset.pattern.permute.xlu0 2
      %1216 = vperm.xlu0 %1215, %v457
      %v1217 = vpop.permute.xlu0 %1216
      %1219 = vset.pattern.permute.xlu0 2
      %1220 = vperm.xlu0 %1219, %v458
      %v1221 = vpop.permute.xlu0 %1220
      %1223 = vset.pattern.permute.xlu0 2
      %1224 = vperm.xlu0 %1223, %v459
      %v1225 = vpop.permute.xlu0 %1224
      %1227 = vset.pattern.permute.xlu0 2
      %1228 = vperm.xlu0 %1227, %v460
      %v1229 = vpop.permute.xlu0 %1228
      %v1231 = vmul.f32 %v1105, %v221
      %v1232 = vmul.f32 %v1109, %v222
      %v1233 = vmul.f32 %v1113, %v223
      %v1234 = vmul.f32 %v1117, %v224
      %v1235 = vmul.f32 %v1121, %v225
      %v1236 = vmul.f32 %v1125, %v226
      %v1237 = vmul.f32 %v1129, %v227
      %v1238 = vmul.f32 %v1133, %v228
      %v1239 = vmul.f32 %v1137, %v229
      %v1240 = vmul.f32 %v1141, %v230
      %v1241 = vmul.f32 %v1145, %v231
      %v1242 = vmul.f32 %v1149, %v232
      %v1243 = vmul.f32 %v1153, %v233
      %v1244 = vmul.f32 %v1157, %v234
      %v1245 = vmul.f32 %v1161, %v235
      %v1246 = vmul.f32 %v1165, %v236
      %v1247 = vmul.f32 %v1169, %v237
      %v1248 = vmul.f32 %v1173, %v238
      %v1249 = vmul.f32 %v1177, %v239
      %v1250 = vmul.f32 %v1181, %v240
      %v1251 = vmul.f32 %v1185, %v241
      %v1252 = vmul.f32 %v1189, %v242
      %v1253 = vmul.f32 %v1193, %v243
      %v1254 = vmul.f32 %v1197, %v244
      %v1255 = vmul.f32 %v1201, %v245
      %v1256 = vmul.f32 %v1205, %v246
      %v1257 = vmul.f32 %v1209, %v247
      %v1258 = vmul.f32 %v1213, %v248
      %v1259 = vmul.f32 %v1217, %v249
      %v1260 = vmul.f32 %v1221, %v250
      %v1261 = vmul.f32 %v1225, %v251
      %v1262 = vmul.f32 %v1229, %v252
      %v1263 = vsel %vm653, %v1231, 0.0
      %v1264 = vsel %vm655, %v1232, 0.0
      %v1265 = vadd.f32 %v1263, %v1264
      %v1266 = vrot.slane %v1265, 4
      %v1267 = vadd.f32 %v1265, %v1266
      %v1268 = vrot.slane %v1267, 2
      %v1269 = vadd.f32 %v1267, %v1268
      %v1270 = vrot.slane %v1269, 1
      %v1271 = vadd.f32 %v1269, %v1270
      %v1272 = vsel %vm653, %v1233, 0.0
      %v1273 = vsel %vm655, %v1234, 0.0
      %v1274 = vadd.f32 %v1272, %v1273
      %v1275 = vrot.slane %v1274, 4
      %v1276 = vadd.f32 %v1274, %v1275
      %v1277 = vrot.slane %v1276, 2
      %v1278 = vadd.f32 %v1276, %v1277
      %v1279 = vrot.slane %v1278, 1
      %v1280 = vadd.f32 %v1278, %v1279
      %v1281 = vsel %vm653, %v1235, 0.0
      %v1282 = vsel %vm655, %v1236, 0.0
      %v1283 = vadd.f32 %v1281, %v1282
      %v1284 = vrot.slane %v1283, 4
      %v1285 = vadd.f32 %v1283, %v1284
      %v1286 = vrot.slane %v1285, 2
      %v1287 = vadd.f32 %v1285, %v1286
      %v1288 = vrot.slane %v1287, 1
      %v1289 = vadd.f32 %v1287, %v1288
      %v1290 = vsel %vm653, %v1237, 0.0
      %v1291 = vsel %vm655, %v1238, 0.0
      %v1292 = vadd.f32 %v1290, %v1291
      %v1293 = vrot.slane %v1292, 4
      %v1294 = vadd.f32 %v1292, %v1293
      %v1295 = vrot.slane %v1294, 2
      %v1296 = vadd.f32 %v1294, %v1295
      %v1297 = vrot.slane %v1296, 1
      %v1298 = vadd.f32 %v1296, %v1297
      %v1299 = vsel %vm653, %v1239, 0.0
      %v1300 = vsel %vm655, %v1240, 0.0
      %v1301 = vadd.f32 %v1299, %v1300
      %v1302 = vrot.slane %v1301, 4
      %v1303 = vadd.f32 %v1301, %v1302
      %v1304 = vrot.slane %v1303, 2
      %v1305 = vadd.f32 %v1303, %v1304
      %v1306 = vrot.slane %v1305, 1
      %v1307 = vadd.f32 %v1305, %v1306
      %v1308 = vsel %vm653, %v1241, 0.0
      %v1309 = vsel %vm655, %v1242, 0.0
      %v1310 = vadd.f32 %v1308, %v1309
      %v1311 = vrot.slane %v1310, 4
      %v1312 = vadd.f32 %v1310, %v1311
      %v1313 = vrot.slane %v1312, 2
      %v1314 = vadd.f32 %v1312, %v1313
      %v1315 = vrot.slane %v1314, 1
      %v1316 = vadd.f32 %v1314, %v1315
      %v1317 = vsel %vm653, %v1243, 0.0
      %v1318 = vsel %vm655, %v1244, 0.0
      %v1319 = vadd.f32 %v1317, %v1318
      %v1320 = vrot.slane %v1319, 4
      %v1321 = vadd.f32 %v1319, %v1320
      %v1322 = vrot.slane %v1321, 2
      %v1323 = vadd.f32 %v1321, %v1322
      %v1324 = vrot.slane %v1323, 1
      %v1325 = vadd.f32 %v1323, %v1324
      %v1326 = vsel %vm653, %v1245, 0.0
      %v1327 = vsel %vm655, %v1246, 0.0
      %v1328 = vadd.f32 %v1326, %v1327
      %v1329 = vrot.slane %v1328, 4
      %v1330 = vadd.f32 %v1328, %v1329
      %v1331 = vrot.slane %v1330, 2
      %v1332 = vadd.f32 %v1330, %v1331
      %v1333 = vrot.slane %v1332, 1
      %v1334 = vadd.f32 %v1332, %v1333
      %v1335 = vsel %vm653, %v1247, 0.0
      %v1336 = vsel %vm655, %v1248, 0.0
      %v1337 = vadd.f32 %v1335, %v1336
      %v1338 = vrot.slane %v1337, 4
      %v1339 = vadd.f32 %v1337, %v1338
      %v1340 = vrot.slane %v1339, 2
      %v1341 = vadd.f32 %v1339, %v1340
      %v1342 = vrot.slane %v1341, 1
      %v1343 = vadd.f32 %v1341, %v1342
      %v1344 = vsel %vm653, %v1249, 0.0
      %v1345 = vsel %vm655, %v1250, 0.0
      %v1346 = vadd.f32 %v1344, %v1345
      %v1347 = vrot.slane %v1346, 4
      %v1348 = vadd.f32 %v1346, %v1347
      %v1349 = vrot.slane %v1348, 2
      %v1350 = vadd.f32 %v1348, %v1349
      %v1351 = vrot.slane %v1350, 1
      %v1352 = vadd.f32 %v1350, %v1351
      %v1353 = vsel %vm653, %v1251, 0.0
      %v1354 = vsel %vm655, %v1252, 0.0
      %v1355 = vadd.f32 %v1353, %v1354
      %v1356 = vrot.slane %v1355, 4
      %v1357 = vadd.f32 %v1355, %v1356
      %v1358 = vrot.slane %v1357, 2
      %v1359 = vadd.f32 %v1357, %v1358
      %v1360 = vrot.slane %v1359, 1
      %v1361 = vadd.f32 %v1359, %v1360
      %v1362 = vsel %vm653, %v1253, 0.0
      %v1363 = vsel %vm655, %v1254, 0.0
      %v1364 = vadd.f32 %v1362, %v1363
      %v1365 = vrot.slane %v1364, 4
      %v1366 = vadd.f32 %v1364, %v1365
      %v1367 = vrot.slane %v1366, 2
      %v1368 = vadd.f32 %v1366, %v1367
      %v1369 = vrot.slane %v1368, 1
      %v1370 = vadd.f32 %v1368, %v1369
      %v1371 = vsel %vm653, %v1255, 0.0
      %v1372 = vsel %vm655, %v1256, 0.0
      %v1373 = vadd.f32 %v1371, %v1372
      %v1374 = vrot.slane %v1373, 4
      %v1375 = vadd.f32 %v1373, %v1374
      %v1376 = vrot.slane %v1375, 2
      %v1377 = vadd.f32 %v1375, %v1376
      %v1378 = vrot.slane %v1377, 1
      %v1379 = vadd.f32 %v1377, %v1378
      %v1380 = vsel %vm653, %v1257, 0.0
      %v1381 = vsel %vm655, %v1258, 0.0
      %v1382 = vadd.f32 %v1380, %v1381
      %v1383 = vrot.slane %v1382, 4
      %v1384 = vadd.f32 %v1382, %v1383
      %v1385 = vrot.slane %v1384, 2
      %v1386 = vadd.f32 %v1384, %v1385
      %v1387 = vrot.slane %v1386, 1
      %v1388 = vadd.f32 %v1386, %v1387
      %v1389 = vsel %vm653, %v1259, 0.0
      %v1390 = vsel %vm655, %v1260, 0.0
      %v1391 = vadd.f32 %v1389, %v1390
      %v1392 = vrot.slane %v1391, 4
      %v1393 = vadd.f32 %v1391, %v1392
      %v1394 = vrot.slane %v1393, 2
      %v1395 = vadd.f32 %v1393, %v1394
      %v1396 = vrot.slane %v1395, 1
      %v1397 = vadd.f32 %v1395, %v1396
      %v1398 = vsel %vm653, %v1261, 0.0
      %v1399 = vsel %vm655, %v1262, 0.0
      %v1400 = vadd.f32 %v1398, %v1399
      %v1401 = vrot.slane %v1400, 4
      %v1402 = vadd.f32 %v1400, %v1401
      %v1403 = vrot.slane %v1402, 2
      %v1404 = vadd.f32 %v1402, %v1403
      %v1405 = vrot.slane %v1404, 1
      %v1406 = vadd.f32 %v1404, %v1405
      %1407 = vset.pattern.permute.xlu0 3
      %1408 = vperm.xlu0 %1407, %v429
      %v1409 = vpop.permute.xlu0 %1408
      %1411 = vset.pattern.permute.xlu0 3
      %1412 = vperm.xlu0 %1411, %v430
      %v1413 = vpop.permute.xlu0 %1412
      %1415 = vset.pattern.permute.xlu0 3
      %1416 = vperm.xlu0 %1415, %v431
      %v1417 = vpop.permute.xlu0 %1416
      %1419 = vset.pattern.permute.xlu0 3
      %1420 = vperm.xlu0 %1419, %v432
      %v1421 = vpop.permute.xlu0 %1420
      %1423 = vset.pattern.permute.xlu0 3
      %1424 = vperm.xlu0 %1423, %v433
      %v1425 = vpop.permute.xlu0 %1424
      %1427 = vset.pattern.permute.xlu0 3
      %1428 = vperm.xlu0 %1427, %v434
      %v1429 = vpop.permute.xlu0 %1428
      %1431 = vset.pattern.permute.xlu0 3
      %1432 = vperm.xlu0 %1431, %v435
      %v1433 = vpop.permute.xlu0 %1432
      %1435 = vset.pattern.permute.xlu0 3
      %1436 = vperm.xlu0 %1435, %v436
      %v1437 = vpop.permute.xlu0 %1436
      %1439 = vset.pattern.permute.xlu0 3
      %1440 = vperm.xlu0 %1439, %v437
      %v1441 = vpop.permute.xlu0 %1440
      %1443 = vset.pattern.permute.xlu0 3
      %1444 = vperm.xlu0 %1443, %v438
      %v1445 = vpop.permute.xlu0 %1444
      %1447 = vset.pattern.permute.xlu0 3
      %1448 = vperm.xlu0 %1447, %v439
      %v1449 = vpop.permute.xlu0 %1448
      %1451 = vset.pattern.permute.xlu0 3
      %1452 = vperm.xlu0 %1451, %v440
      %v1453 = vpop.permute.xlu0 %1452
      %1455 = vset.pattern.permute.xlu0 3
      %1456 = vperm.xlu0 %1455, %v441
      %v1457 = vpop.permute.xlu0 %1456
      %1459 = vset.pattern.permute.xlu0 3
      %1460 = vperm.xlu0 %1459, %v442
      %v1461 = vpop.permute.xlu0 %1460
      %1463 = vset.pattern.permute.xlu0 3
      %1464 = vperm.xlu0 %1463, %v443
      %v1465 = vpop.permute.xlu0 %1464
      %1467 = vset.pattern.permute.xlu0 3
      %1468 = vperm.xlu0 %1467, %v444
      %v1469 = vpop.permute.xlu0 %1468
      %1471 = vset.pattern.permute.xlu0 3
      %1472 = vperm.xlu0 %1471, %v445
      %v1473 = vpop.permute.xlu0 %1472
      %1475 = vset.pattern.permute.xlu0 3
      %1476 = vperm.xlu0 %1475, %v446
      %v1477 = vpop.permute.xlu0 %1476
      %1479 = vset.pattern.permute.xlu0 3
      %1480 = vperm.xlu0 %1479, %v447
      %v1481 = vpop.permute.xlu0 %1480
      %1483 = vset.pattern.permute.xlu0 3
      %1484 = vperm.xlu0 %1483, %v448
      %v1485 = vpop.permute.xlu0 %1484
      %1487 = vset.pattern.permute.xlu0 3
      %1488 = vperm.xlu0 %1487, %v449
      %v1489 = vpop.permute.xlu0 %1488
      %1491 = vset.pattern.permute.xlu0 3
      %1492 = vperm.xlu0 %1491, %v450
      %v1493 = vpop.permute.xlu0 %1492
      %1495 = vset.pattern.permute.xlu0 3
      %1496 = vperm.xlu0 %1495, %v451
      %v1497 = vpop.permute.xlu0 %1496
      %1499 = vset.pattern.permute.xlu0 3
      %1500 = vperm.xlu0 %1499, %v452
      %v1501 = vpop.permute.xlu0 %1500
      %1503 = vset.pattern.permute.xlu0 3
      %1504 = vperm.xlu0 %1503, %v453
      %v1505 = vpop.permute.xlu0 %1504
      %1507 = vset.pattern.permute.xlu0 3
      %1508 = vperm.xlu0 %1507, %v454
      %v1509 = vpop.permute.xlu0 %1508
      %1511 = vset.pattern.permute.xlu0 3
      %1512 = vperm.xlu0 %1511, %v455
      %v1513 = vpop.permute.xlu0 %1512
      %1515 = vset.pattern.permute.xlu0 3
      %1516 = vperm.xlu0 %1515, %v456
      %v1517 = vpop.permute.xlu0 %1516
      %1519 = vset.pattern.permute.xlu0 3
      %1520 = vperm.xlu0 %1519, %v457
      %v1521 = vpop.permute.xlu0 %1520
      %1523 = vset.pattern.permute.xlu0 3
      %1524 = vperm.xlu0 %1523, %v458
      %v1525 = vpop.permute.xlu0 %1524
      %1527 = vset.pattern.permute.xlu0 3
      %1528 = vperm.xlu0 %1527, %v459
      %v1529 = vpop.permute.xlu0 %1528
      %1531 = vset.pattern.permute.xlu0 3
      %1532 = vperm.xlu0 %1531, %v460
      %v1533 = vpop.permute.xlu0 %1532
      %v1535 = vmul.f32 %v1409, %v221
      %v1536 = vmul.f32 %v1413, %v222
      %v1537 = vmul.f32 %v1417, %v223
      %v1538 = vmul.f32 %v1421, %v224
      %v1539 = vmul.f32 %v1425, %v225
      %v1540 = vmul.f32 %v1429, %v226
      %v1541 = vmul.f32 %v1433, %v227
      %v1542 = vmul.f32 %v1437, %v228
      %v1543 = vmul.f32 %v1441, %v229
      %v1544 = vmul.f32 %v1445, %v230
      %v1545 = vmul.f32 %v1449, %v231
      %v1546 = vmul.f32 %v1453, %v232
      %v1547 = vmul.f32 %v1457, %v233
      %v1548 = vmul.f32 %v1461, %v234
      %v1549 = vmul.f32 %v1465, %v235
      %v1550 = vmul.f32 %v1469, %v236
      %v1551 = vmul.f32 %v1473, %v237
      %v1552 = vmul.f32 %v1477, %v238
      %v1553 = vmul.f32 %v1481, %v239
      %v1554 = vmul.f32 %v1485, %v240
      %v1555 = vmul.f32 %v1489, %v241
      %v1556 = vmul.f32 %v1493, %v242
      %v1557 = vmul.f32 %v1497, %v243
      %v1558 = vmul.f32 %v1501, %v244
      %v1559 = vmul.f32 %v1505, %v245
      %v1560 = vmul.f32 %v1509, %v246
      %v1561 = vmul.f32 %v1513, %v247
      %v1562 = vmul.f32 %v1517, %v248
      %v1563 = vmul.f32 %v1521, %v249
      %v1564 = vmul.f32 %v1525, %v250
      %v1565 = vmul.f32 %v1529, %v251
      %v1566 = vmul.f32 %v1533, %v252
      %v1567 = vsel %vm653, %v1535, 0.0
      %v1568 = vsel %vm655, %v1536, 0.0
      %v1569 = vadd.f32 %v1567, %v1568
      %v1570 = vrot.slane %v1569, 4
      %v1571 = vadd.f32 %v1569, %v1570
      %v1572 = vrot.slane %v1571, 2
      %v1573 = vadd.f32 %v1571, %v1572
      %v1574 = vrot.slane %v1573, 1
      %v1575 = vadd.f32 %v1573, %v1574
      %v1576 = vsel %vm653, %v1537, 0.0
      %v1577 = vsel %vm655, %v1538, 0.0
      %v1578 = vadd.f32 %v1576, %v1577
      %v1579 = vrot.slane %v1578, 4
      %v1580 = vadd.f32 %v1578, %v1579
      %v1581 = vrot.slane %v1580, 2
      %v1582 = vadd.f32 %v1580, %v1581
      %v1583 = vrot.slane %v1582, 1
      %v1584 = vadd.f32 %v1582, %v1583
      %v1585 = vsel %vm653, %v1539, 0.0
      %v1586 = vsel %vm655, %v1540, 0.0
      %v1587 = vadd.f32 %v1585, %v1586
      %v1588 = vrot.slane %v1587, 4
      %v1589 = vadd.f32 %v1587, %v1588
      %v1590 = vrot.slane %v1589, 2
      %v1591 = vadd.f32 %v1589, %v1590
      %v1592 = vrot.slane %v1591, 1
      %v1593 = vadd.f32 %v1591, %v1592
      %v1594 = vsel %vm653, %v1541, 0.0
      %v1595 = vsel %vm655, %v1542, 0.0
      %v1596 = vadd.f32 %v1594, %v1595
      %v1597 = vrot.slane %v1596, 4
      %v1598 = vadd.f32 %v1596, %v1597
      %v1599 = vrot.slane %v1598, 2
      %v1600 = vadd.f32 %v1598, %v1599
      %v1601 = vrot.slane %v1600, 1
      %v1602 = vadd.f32 %v1600, %v1601
      %v1603 = vsel %vm653, %v1543, 0.0
      %v1604 = vsel %vm655, %v1544, 0.0
      %v1605 = vadd.f32 %v1603, %v1604
      %v1606 = vrot.slane %v1605, 4
      %v1607 = vadd.f32 %v1605, %v1606
      %v1608 = vrot.slane %v1607, 2
      %v1609 = vadd.f32 %v1607, %v1608
      %v1610 = vrot.slane %v1609, 1
      %v1611 = vadd.f32 %v1609, %v1610
      %v1612 = vsel %vm653, %v1545, 0.0
      %v1613 = vsel %vm655, %v1546, 0.0
      %v1614 = vadd.f32 %v1612, %v1613
      %v1615 = vrot.slane %v1614, 4
      %v1616 = vadd.f32 %v1614, %v1615
      %v1617 = vrot.slane %v1616, 2
      %v1618 = vadd.f32 %v1616, %v1617
      %v1619 = vrot.slane %v1618, 1
      %v1620 = vadd.f32 %v1618, %v1619
      %v1621 = vsel %vm653, %v1547, 0.0
      %v1622 = vsel %vm655, %v1548, 0.0
      %v1623 = vadd.f32 %v1621, %v1622
      %v1624 = vrot.slane %v1623, 4
      %v1625 = vadd.f32 %v1623, %v1624
      %v1626 = vrot.slane %v1625, 2
      %v1627 = vadd.f32 %v1625, %v1626
      %v1628 = vrot.slane %v1627, 1
      %v1629 = vadd.f32 %v1627, %v1628
      %v1630 = vsel %vm653, %v1549, 0.0
      %v1631 = vsel %vm655, %v1550, 0.0
      %v1632 = vadd.f32 %v1630, %v1631
      %v1633 = vrot.slane %v1632, 4
      %v1634 = vadd.f32 %v1632, %v1633
      %v1635 = vrot.slane %v1634, 2
      %v1636 = vadd.f32 %v1634, %v1635
      %v1637 = vrot.slane %v1636, 1
      %v1638 = vadd.f32 %v1636, %v1637
      %v1639 = vsel %vm653, %v1551, 0.0
      %v1640 = vsel %vm655, %v1552, 0.0
      %v1641 = vadd.f32 %v1639, %v1640
      %v1642 = vrot.slane %v1641, 4
      %v1643 = vadd.f32 %v1641, %v1642
      %v1644 = vrot.slane %v1643, 2
      %v1645 = vadd.f32 %v1643, %v1644
      %v1646 = vrot.slane %v1645, 1
      %v1647 = vadd.f32 %v1645, %v1646
      %v1648 = vsel %vm653, %v1553, 0.0
      %v1649 = vsel %vm655, %v1554, 0.0
      %v1650 = vadd.f32 %v1648, %v1649
      %v1651 = vrot.slane %v1650, 4
      %v1652 = vadd.f32 %v1650, %v1651
      %v1653 = vrot.slane %v1652, 2
      %v1654 = vadd.f32 %v1652, %v1653
      %v1655 = vrot.slane %v1654, 1
      %v1656 = vadd.f32 %v1654, %v1655
      %v1657 = vsel %vm653, %v1555, 0.0
      %v1658 = vsel %vm655, %v1556, 0.0
      %v1659 = vadd.f32 %v1657, %v1658
      %v1660 = vrot.slane %v1659, 4
      %v1661 = vadd.f32 %v1659, %v1660
      %v1662 = vrot.slane %v1661, 2
      %v1663 = vadd.f32 %v1661, %v1662
      %v1664 = vrot.slane %v1663, 1
      %v1665 = vadd.f32 %v1663, %v1664
      %v1666 = vsel %vm653, %v1557, 0.0
      %v1667 = vsel %vm655, %v1558, 0.0
      %v1668 = vadd.f32 %v1666, %v1667
      %v1669 = vrot.slane %v1668, 4
      %v1670 = vadd.f32 %v1668, %v1669
      %v1671 = vrot.slane %v1670, 2
      %v1672 = vadd.f32 %v1670, %v1671
      %v1673 = vrot.slane %v1672, 1
      %v1674 = vadd.f32 %v1672, %v1673
      %v1675 = vsel %vm653, %v1559, 0.0
      %v1676 = vsel %vm655, %v1560, 0.0
      %v1677 = vadd.f32 %v1675, %v1676
      %v1678 = vrot.slane %v1677, 4
      %v1679 = vadd.f32 %v1677, %v1678
      %v1680 = vrot.slane %v1679, 2
      %v1681 = vadd.f32 %v1679, %v1680
      %v1682 = vrot.slane %v1681, 1
      %v1683 = vadd.f32 %v1681, %v1682
      %v1684 = vsel %vm653, %v1561, 0.0
      %v1685 = vsel %vm655, %v1562, 0.0
      %v1686 = vadd.f32 %v1684, %v1685
      %v1687 = vrot.slane %v1686, 4
      %v1688 = vadd.f32 %v1686, %v1687
      %v1689 = vrot.slane %v1688, 2
      %v1690 = vadd.f32 %v1688, %v1689
      %v1691 = vrot.slane %v1690, 1
      %v1692 = vadd.f32 %v1690, %v1691
      %v1693 = vsel %vm653, %v1563, 0.0
      %v1694 = vsel %vm655, %v1564, 0.0
      %v1695 = vadd.f32 %v1693, %v1694
      %v1696 = vrot.slane %v1695, 4
      %v1697 = vadd.f32 %v1695, %v1696
      %v1698 = vrot.slane %v1697, 2
      %v1699 = vadd.f32 %v1697, %v1698
      %v1700 = vrot.slane %v1699, 1
      %v1701 = vadd.f32 %v1699, %v1700
      %v1702 = vsel %vm653, %v1565, 0.0
      %v1703 = vsel %vm655, %v1566, 0.0
      %v1704 = vadd.f32 %v1702, %v1703
      %v1705 = vrot.slane %v1704, 4
      %v1706 = vadd.f32 %v1704, %v1705
      %v1707 = vrot.slane %v1706, 2
      %v1708 = vadd.f32 %v1706, %v1707
      %v1709 = vrot.slane %v1708, 1
      %v1710 = vadd.f32 %v1708, %v1709
      %vm1727 = vcmask 1041409
      %v1728 = vsel %vm1727, %v672, %v663
      %vm1729 = vcmask 1042434
      %v1730 = vsel %vm1729, %v681, %v1728
      %vm1731 = vcmask 1043459
      %v1732 = vsel %vm1731, %v690, %v1730
      %vm1733 = vcmask 1044484
      %v1734 = vsel %vm1733, %v699, %v1732
      %vm1735 = vcmask 1045509
      %v1736 = vsel %vm1735, %v708, %v1734
      %vm1737 = vcmask 1046534
      %v1738 = vsel %vm1737, %v717, %v1736
      %vm1739 = vcmask 1047559
      %v1740 = vsel %vm1739, %v726, %v1738
      %v1741 = vsel %vm1727, %v744, %v735
      %v1742 = vsel %vm1729, %v753, %v1741
      %v1743 = vsel %vm1731, %v762, %v1742
      %v1744 = vsel %vm1733, %v771, %v1743
      %v1745 = vsel %vm1735, %v780, %v1744
      %v1746 = vsel %vm1737, %v789, %v1745
      %v1747 = vsel %vm1739, %v798, %v1746
      %v1766 = vsel %vm1727, %v976, %v967
      %v1767 = vsel %vm1729, %v985, %v1766
      %v1768 = vsel %vm1731, %v994, %v1767
      %v1769 = vsel %vm1733, %v1003, %v1768
      %v1770 = vsel %vm1735, %v1012, %v1769
      %v1771 = vsel %vm1737, %v1021, %v1770
      %v1772 = vsel %vm1739, %v1030, %v1771
      %v1773 = vsel %vm1727, %v1048, %v1039
      %v1774 = vsel %vm1729, %v1057, %v1773
      %v1775 = vsel %vm1731, %v1066, %v1774
      %v1776 = vsel %vm1733, %v1075, %v1775
      %v1777 = vsel %vm1735, %v1084, %v1776
      %v1778 = vsel %vm1737, %v1093, %v1777
      %v1779 = vsel %vm1739, %v1102, %v1778
      %1780 = vrot.lane.b32.xlu0 %v1772, 4
      %v1781 = vpop.permute.xlu0 %1780
      %1782 = vrot.lane.b32.xlu0 %v1779, 4
      %v1783 = vpop.permute.xlu0 %1782
      %v1802 = vsel %vm1727, %v1280, %v1271
      %v1803 = vsel %vm1729, %v1289, %v1802
      %v1804 = vsel %vm1731, %v1298, %v1803
      %v1805 = vsel %vm1733, %v1307, %v1804
      %v1806 = vsel %vm1735, %v1316, %v1805
      %v1807 = vsel %vm1737, %v1325, %v1806
      %v1808 = vsel %vm1739, %v1334, %v1807
      %v1809 = vsel %vm1727, %v1352, %v1343
      %v1810 = vsel %vm1729, %v1361, %v1809
      %v1811 = vsel %vm1731, %v1370, %v1810
      %v1812 = vsel %vm1733, %v1379, %v1811
      %v1813 = vsel %vm1735, %v1388, %v1812
      %v1814 = vsel %vm1737, %v1397, %v1813
      %v1815 = vsel %vm1739, %v1406, %v1814
      %1816 = vrot.lane.b32.xlu0 %v1808, 8
      %v1817 = vpop.permute.xlu0 %1816
      %1818 = vrot.lane.b32.xlu0 %v1815, 8
      %v1819 = vpop.permute.xlu0 %1818
      %v1838 = vsel %vm1727, %v1584, %v1575
      %v1839 = vsel %vm1729, %v1593, %v1838
      %v1840 = vsel %vm1731, %v1602, %v1839
      %v1841 = vsel %vm1733, %v1611, %v1840
      %v1842 = vsel %vm1735, %v1620, %v1841
      %v1843 = vsel %vm1737, %v1629, %v1842
      %v1844 = vsel %vm1739, %v1638, %v1843
      %v1845 = vsel %vm1727, %v1656, %v1647
      %v1846 = vsel %vm1729, %v1665, %v1845
      %v1847 = vsel %vm1731, %v1674, %v1846
      %v1848 = vsel %vm1733, %v1683, %v1847
      %v1849 = vsel %vm1735, %v1692, %v1848
      %v1850 = vsel %vm1737, %v1701, %v1849
      %v1851 = vsel %vm1739, %v1710, %v1850
      %1852 = vrot.lane.b32.xlu0 %v1844, 12
      %v1853 = vpop.permute.xlu0 %1852
      %1854 = vrot.lane.b32.xlu0 %v1851, 12
      %v1855 = vpop.permute.xlu0 %1854
      %v1858 = vsel %vm653, %v1740, %v1781
      %v1859 = vsel %vm653, %v1747, %v1783
      %vm1860 = vcmask 64512
      %v1861 = vsel %vm1860, %v1858, %v1817
      %v1862 = vsel %vm1860, %v1859, %v1819
      %vm1863 = vcmask 97280
      %v1864 = vsel %vm1863, %v1861, %v1853
      %v1865 = vsel %vm1863, %v1862, %v1855
      %vm1866 = vcmask 130048
      %1867 = vst.msk [vmem:[%s170] sm:$0xff] %vm1866, %v1864
      %1868 = vst.msk [vmem:[%s170 + $0x8] sm:$0xff] %vm1866, %v1865
      %s1869 = smul.u32 2, %s13
      %p1870 = scmp.lt.s32.totalorder %s1869, 3
      %s1871 = scalar_select %p1870, %s1869, 3
      %s1872 = smul.addr %s1871, 8
      %s1873 = scalar_lea.vmem %s2, %s1872
      // Predicated region
      $region29: #{tpu_custom_call.1} parent=27 // pred_check
        %p1874 = pneg %p83
      $region30: #{tpu_custom_call.1} parent=27 // pred_check_branch
        %1876 = sbr.rel (%p1874) target = $region32
      $region31: #{tpu_custom_call.1} parent=27 // pred_region
        %s1877 = smul.u32 2, %s13
      $region32: #{tpu_custom_call.1} parent=27 // pred_fallthru
        _
    $region28: #{tpu_custom_call.1} parent=5 // pred_fallthru
      _
    %p1878 = scmp.le.s32.totalorder 2, %s8
    // Predicated region
    $region33: #{tpu_custom_call.1} parent=5 // pred_check
      %p1879 = pneg %p1878
    $region34: #{tpu_custom_call.1} parent=5 // pred_check_branch
      %1881 = sbr.rel (%p1879) target = $region36
    $region35: #{tpu_custom_call.1} parent=5 // pred_region
      %s1882 = ssub.s32 %s8, 2
      // Predicated region
      $region37: #{tpu_custom_call.1} parent=35 // pred_check
        %p1883 = pneg %p89
      $region38: #{tpu_custom_call.1} parent=35 // pred_check_branch
        %1885 = sbr.rel (%p1883) target = $region40
      $region39: #{tpu_custom_call.1} parent=35 // pred_region
        %s1886 = smul.u32 2, %s14
        %p1887 = scmp.lt.s32.totalorder %s1886, 3
        %s1888 = scalar_select %p1887, %s1886, 3
        %s1889 = smul.addr %s1888, 8
        %s1890 = scalar_lea.vmem %s2, %s1889
      $region40: #{tpu_custom_call.1} parent=35 // pred_fallthru
        _
    $region36: #{tpu_custom_call.1} parent=5 // pred_fallthru
      _
  $region6: #{tpu_custom_call.1} parent=0 // loop_footer
    %s12 = sadd.s32 1, %s8
  $region7: #{tpu_custom_call.1} parent=0 // loop_footer_branch
    %7 = sbr.rel target = $region3
  $region8: #{tpu_custom_call.1} parent=0 // loop_exit
    _

</llo_original>
